<compile_context>
chip_gen: v7x
topology: tpu7x:2x2x1
jax: 0.10.0
libtpu: 0.0.40
codegen_flags: <defaults>
</compile_context>

<pallas_src>
import numpy as np
import jax
import jax.numpy as jnp
from jax.experimental import pallas as pl
from jax.experimental.pallas import tpu as pltpu


# ---------------------------------------------------------------------------
# Offline helpers
# ---------------------------------------------------------------------------
def adaptive_avg_pool_matrix(length, out):
    # PyTorch AdaptiveAvgPool1d bins: start=floor(i*L/out), end=ceil((i+1)*L/out)
    P = np.zeros((length, out), np.float32)
    for i in range(out):
        s = (i * length) // out
        e = -((-(i + 1) * length) // out)
        P[s:e, i] = 1.0 / (e - s)
    return P


def init_params(key):
    ks = jax.random.split(key, 8)

    def u(k, shape, fan_in):
        bound = 1.0 / np.sqrt(fan_in)
        return jax.random.uniform(k, shape, jnp.float32, -bound, bound)

    return {
        # conv1: 3->64, k=3 (stored (KH*KW*CI, CO), row order (di, dj, ci))
        "w1": u(ks[0], (27, 64), 27),
        "b1": u(ks[1], (1, 64), 27),
        # conv2: 64->32, k=2 (stored (KH*KW*CI, CO), row order (di, dj, ci))
        "w2": u(ks[2], (256, 32), 256),
        "b2": u(ks[3], (1, 32), 256),
        # BatchNorm2d(32, 48, 6): affine + running stats (default init), eps=48
        "gamma": jnp.ones((32,), jnp.float32),
        "beta": jnp.zeros((32,), jnp.float32),
        "running_mean": jnp.zeros((32,), jnp.float32),
        "running_var": jnp.ones((32,), jnp.float32),
        "bn_eps": 48.0,
        # dn2: Linear(256,128), dn3: Linear(128,2) (stored (in, out))
        "w_dn2": u(ks[4], (256, 128), 256),
        "b_dn2": u(ks[5], (1, 128), 256),
        "w_dn3": u(ks[6], (128, 2), 128),
        "b_dn3": u(ks[7], (1, 2), 128),
    }


def fuse_params(p, height=16, width=16):
    """One-time offline folding into the banded/packed form the kernel consumes.

    * w1b (3*64, 1024) bf16: conv1 as 3 banded matmuls over the (W,C)=48(+ones)
      lane axis; columns ordered (col-parity, pooled-col j, out-chan co), each
      parity half padded 448->512 lanes.  conv1 bias folded through the ones lane.
    * w2b (2*512, 192) bf16: conv2 (2x2) as 2 banded matmuls over the pooled
      (j, co) lane axis; columns ordered (j2, c2).
    * wt (12, 192) f32 / bf (1, 2) f32: eval-mode BN affine -> NCHW flatten ->
      AdaptiveAvgPool1d(256) -> Linear(256,128) -> Linear(128,2), collapsed into
      one per-position weight tile (rows 0..5: logit 0, rows 6..11: logit 1).
    """
    cin, c1, c2o = 3, 64, 32
    oh1, ow1 = height - 2, width - 2            # 14, 14 (conv1 output)
    assert oh1 % 2 == 0 and ow1 % 2 == 0
    ph, pw = oh1 // 2, ow1 // 2                 # 7, 7   (after max-pool)
    oh2, ow2 = ph - 1, pw - 1                   # 6, 6   (conv2 output)
    spots = oh2 * ow2                           # 36
    flat = c2o * spots                          # 1152 (NCHW flatten length)

    lanes_x = width * cin                       # 48 valid input lanes
    kin = ((lanes_x + 1 + 63) // 64) * 64       # 64 (ones lane at index 48)
    half1 = ((pw * c1 + 127) // 128) * 128      # 512 (448 valid + zero pad)
    n2 = ow2 * c2o                              # 192

    w1 = np.asarray(p["w1"], np.float32).reshape(3, 3, cin, c1)   # (di,dj,ci,co)
    b1 = np.asarray(p["b1"], np.float32).reshape(c1)
    w2 = np.asarray(p["w2"], np.float32).reshape(2, 2, c1, c2o)   # (d1,d2,c,c2)
    b2 = np.asarray(p["b2"], np.float32).reshape(c2o)

    # conv1 banded weights; column index = (b%2)*half1 + (b//2)*64 + co
    w1b = np.zeros((3, kin, 2 * half1), np.float32)
    for di in range(3):
        for dj in range(3):
            for b in range(ow1):
                col = (b % 2) * half1 + (b // 2) * c1
                row = 3 * (b + dj)
                w1b[di, row:row + cin, col:col + c1] = w1[di, dj]
    for b in range(ow1):                        # bias via the constant ones lane
        col = (b % 2) * half1 + (b // 2) * c1
        w1b[0, lanes_x, col:col + c1] = b1
    w1b = jnp.asarray(w1b.reshape(3 * kin, 2 * half1), jnp.bfloat16)

    # conv2 banded weights; row index = (j2+d2)*64 + co, column = j2*32 + c2
    w2b = np.zeros((2, half1, n2), np.float32)
    for d1 in range(2):
        for d2 in range(2):
            for j2 in range(ow2):
                w2b[d1, (j2 + d2) * c1:(j2 + d2 + 1) * c1,
                    j2 * c2o:(j2 + 1) * c2o] = w2[d1, d2]
    w2b = jnp.asarray(w2b.reshape(2 * half1, n2), jnp.bfloat16)
    b2b = jnp.asarray(np.tile(b2, ow2)[None, :], jnp.float32)          # (1, 192)

    # eval-mode BN as a per-channel affine, folded into the linear tail.
    scale = np.asarray(p["gamma"]) / np.sqrt(np.asarray(p["running_var"])
                                             + p["bn_eps"])
    shift = np.asarray(p["beta"]) - np.asarray(p["running_mean"]) * scale
    P = adaptive_avg_pool_matrix(flat, 256)                            # (1152, 256)
    wf = P @ np.asarray(p["w_dn2"]) @ np.asarray(p["w_dn3"])           # (1152, 2)
    bf = np.asarray(p["b_dn2"]) @ np.asarray(p["w_dn3"]) + np.asarray(p["b_dn3"])
    scale_f = np.repeat(scale, spots)           # flatten index f = c2*36 + i2*6 + j2
    shift_f = np.repeat(shift, spots)
    bf = bf + shift_f[None, :] @ wf                                    # (1, 2)
    wt_full = wf * scale_f[:, None]                                    # (1152, 2)
    wt = wt_full.reshape(c2o, oh2, ow2, 2).transpose(1, 2, 0, 3)       # (i2,j2,c2,d)
    wt = wt.reshape(oh2, ow2 * c2o, 2)                                 # (6, 192, 2)
    wt = np.concatenate([wt[..., 0], wt[..., 1]], axis=0)              # (12, 192)

    return {
        "w1b": w1b, "w2b": w2b, "b2b": b2b,
        "wt": jnp.asarray(wt, jnp.float32),
        "bf": jnp.asarray(bf, jnp.float32),
    }


# ---------------------------------------------------------------------------
# Fused Pallas kernel (one grid step = one sample)
# ---------------------------------------------------------------------------
def _covnet_kernel(x_ref, w1_ref, w2_ref, b2_ref, wt_ref, bf_ref, o_ref):
    """conv1+ReLU+maxpool -> conv2+ReLU -> folded BN/flatten/avg-pool/MLP tail.

    x : (16, 64) bf16   rows 0..7 = even input rows, 8..15 = odd input rows;
                        lanes = (w, ci) with a constant 1.0 at lane 48 (bias fold)
    w1: (192, 1024) bf16  three (64, 1024) banded conv1 weights (bias folded)
    w2: (1024, 192) bf16  two (512, 192) banded conv2 weights
    b2: (1, 192) f32, wt: (12, 192) f32, bf: (1, 2) f32, o: (1, 8, 2) f32
    """
    hh = x_ref.shape[0] // 2        # rows per parity plane (8)
    ph = hh - 1                     # pooled rows            (7)
    oh2 = ph - 1                    # conv2 output rows      (6)
    kin = x_ref.shape[1]            # padded input lanes     (64)
    half1 = w1_ref.shape[1] // 2    # lanes per col-parity half (512)

    dot = lambda a, b: jnp.dot(a, b, preferred_element_type=jnp.float32)

    x = x_ref[...]                              # (16, 64) bf16
    xe0 = x[0:ph]                               # input rows 2i
    xe1 = x[1:ph + 1]                           # input rows 2i + 2
    xo0 = x[hh:hh + ph]                         # input rows 2i + 1
    xo1 = x[hh + 1:hh + ph + 1]                 # input rows 2i + 3

    w1_0 = w1_ref[pl.ds(0, kin), :]
    w1_1 = w1_ref[pl.ds(kin, kin), :]
    w1_2 = w1_ref[pl.ds(2 * kin, kin), :]

    # conv1 at even / odd output rows (bias enters through the ones lane of w1_0)
    ye = dot(xe0, w1_0) + dot(xo0, w1_1) + dot(xe1, w1_2)      # (7, 1024) f32
    yo = dot(xo0, w1_0) + dot(xe1, w1_1) + dot(xo1, w1_2)      # (7, 1024) f32
    # 2x2 max-pool: rows = even/odd conv rows, lane halves = even/odd conv cols
    y = jnp.maximum(ye, yo)
    y = jnp.maximum(y[:, :half1], y[:, half1:])                # (7, 512)
    h1 = jnp.maximum(y, 0.0).astype(jnp.bfloat16)              # ReLU

    # conv2 (2x2) as two banded matmuls over the pooled (j, c) lane layout
    y2 = (dot(h1[0:oh2], w2_ref[pl.ds(0, half1), :]) +
          dot(h1[1:oh2 + 1], w2_ref[pl.ds(half1, half1), :]))  # (6, 192) f32
    a2 = jnp.maximum(y2 + b2_ref[...], 0.0)

    # folded tail: eval-BN affine -> NCHW flatten -> AdaptiveAvgPool1d(256)
    # -> Linear(256,128) -> Linear(128,2)   (dropouts = identity)
    wt = wt_ref[...]                                           # (12, 192)
    t0 = jnp.sum(a2 * wt[0:oh2], keepdims=True)                # (1, 1)
    t1 = jnp.sum(a2 * wt[oh2:2 * oh2], keepdims=True)          # (1, 1)
    res = jnp.concatenate([t0, t1], axis=-1) + bf_ref[...]     # (1, 2)
    o_ref[...] = jnp.broadcast_to(res, o_ref.shape)


# ---------------------------------------------------------------------------
# Forward wrapper
# ---------------------------------------------------------------------------
def covnet_forward(x_nchw, fp):
    n, c, h, w = x_nchw.shape
    kin = fp["w1b"].shape[0] // 3                  # padded input lane count (64)

    # 1x-data layout shuffle (no im2col duplication in HBM):
    # NCHW -> NHWC -> lanes=(w, ci) -> append ones lane (conv1 bias fold) ->
    # split rows into even/odd planes -> bf16.
    x = jnp.transpose(x_nchw, (0, 2, 3, 1)).astype(jnp.float32).reshape(n, h, w * c)
    ones = jnp.ones((n, h, 1), jnp.float32)
    pad = jnp.zeros((n, h, kin - w * c - 1), jnp.float32)
    x = jnp.concatenate([x, ones, pad], axis=-1)                  # (N, 16, 64)
    x = x.reshape(n, h // 2, 2, kin).transpose(0, 2, 1, 3)        # (N, 2, 8, 64)
    x = x.reshape(n * h, kin).astype(jnp.bfloat16)

    out = pl.pallas_call(
        _covnet_kernel,
        out_shape=jax.ShapeDtypeStruct((n, 8, 2), jnp.float32),
        grid=(n,),
        in_specs=[
            pl.BlockSpec((h, kin), lambda i: (i, 0)),
            pl.BlockSpec(fp["w1b"].shape, lambda i: (0, 0)),
            pl.BlockSpec(fp["w2b"].shape, lambda i: (0, 0)),
            pl.BlockSpec(fp["b2b"].shape, lambda i: (0, 0)),
            pl.BlockSpec(fp["wt"].shape, lambda i: (0, 0)),
            pl.BlockSpec(fp["bf"].shape, lambda i: (0, 0)),
        ],
        out_specs=pl.BlockSpec((1, 8, 2), lambda i: (i, 0, 0)),
        compiler_params=pltpu.CompilerParams(
            dimension_semantics=("parallel",),
            vmem_limit_bytes=32 * 1024 * 1024,
        ),
    )(x, fp["w1b"], fp["w2b"], fp["b2b"], fp["wt"], fp["bf"])
    return out[:, 0, :]                                            # (N, 2)


def covnet_reference(x_nchw, p):
    """Pure-JAX eval-mode reference of the PyTorch forward (for offline testing
    of the offline folding; not used in the benchmarked path)."""
    x = jnp.transpose(x_nchw, (0, 2, 3, 1)).astype(jnp.float32)
    dn = ("NHWC", "HWIO", "NHWC")
    c1 = jax.lax.conv_general_dilated(x, p["w1"].reshape(3, 3, 3, 64), (1, 1),
                                      "VALID", dimension_numbers=dn)
    c1 = jax.nn.relu(c1 + p["b1"].reshape(1, 1, 1, 64))
    c1 = jax.lax.reduce_window(c1, -jnp.inf, jax.lax.max,
                               (1, 2, 2, 1), (1, 2, 2, 1), "VALID")
    c2 = jax.lax.conv_general_dilated(c1, p["w2"].reshape(2, 2, 64, 32), (1, 1),
                                      "VALID", dimension_numbers=dn)
    c2 = jax.nn.relu(c2 + p["b2"].reshape(1, 1, 1, 32))
    scale = p["gamma"] / jnp.sqrt(p["running_var"] + p["bn_eps"])
    shift = p["beta"] - p["running_mean"] * scale
    bn = c2 * scale + shift
    flat = jnp.transpose(bn, (0, 3, 1, 2)).reshape(x.shape[0], -1)  # NCHW flatten
    pooled = flat @ jnp.asarray(adaptive_avg_pool_matrix(flat.shape[1], 256))
    hmid = pooled @ p["w_dn2"] + p["b_dn2"]
    return hmid @ p["w_dn3"] + p["b_dn3"]


if __name__ == "__main__":
    key = jax.random.PRNGKey(0)
    pkey, xkey = jax.random.split(key)

    # NCHW input: batch=2, 3 channels, 16x16 spatial.
    # conv1: 16->14, maxpool -> 7, conv2 -> 6  =>  flatten length 32*6*6 = 1152
    x = jax.random.normal(xkey, (2, 3, 16, 16), jnp.float32)

    raw = init_params(pkey)
    fp = fuse_params(raw, height=16, width=16)

    fwd = jax.jit(covnet_forward)
    out = jax.block_until_ready(fwd(x, fp))
    assert out.shape == (2, 2) and out.dtype == jnp.float32
    print("KERNEL_OK")
</pallas_src>

<mosaic_0001>
module attributes {stable_mosaic.version = 11 : i64} {
  func.func @_covnet_kernel(%arg0: i32, %arg1: memref<16x64xbf16, #tpu.memory_space<vmem>>, %arg2: memref<192x1024xbf16, #tpu.memory_space<vmem>>, %arg3: memref<1024x192xbf16, #tpu.memory_space<vmem>>, %arg4: memref<1x192xf32, #tpu.memory_space<vmem>>, %arg5: memref<12x192xf32, #tpu.memory_space<vmem>>, %arg6: memref<1x2xf32, #tpu.memory_space<vmem>>, %arg7: memref<1x8x2xf32, #tpu.memory_space<vmem>>) attributes {dimension_semantics = [#tpu.dimension_semantics<parallel>], iteration_bounds = array<i64: 2>, scalar_prefetch = 0 : i64, scratch_operands = 0 : i64, tpu.core_type = #tpu.core_type<tc>, window_params = [{transform_indices = @transform_0, window_bounds = array<i64: 16, 64>}, {pipeline_mode = #tpu.pipeline_mode<synchronous>, transform_indices = @transform_1, window_bounds = array<i64: 192, 1024>}, {pipeline_mode = #tpu.pipeline_mode<synchronous>, transform_indices = @transform_2, window_bounds = array<i64: 1024, 192>}, {pipeline_mode = #tpu.pipeline_mode<synchronous>, transform_indices = @transform_3, window_bounds = array<i64: 1, 192>}, {pipeline_mode = #tpu.pipeline_mode<synchronous>, transform_indices = @transform_4, window_bounds = array<i64: 12, 192>}, {pipeline_mode = #tpu.pipeline_mode<synchronous>, transform_indices = @transform_5, window_bounds = array<i64: 1, 2>}, {transform_indices = @transform_6, window_bounds = array<i64: 1, 8, 2>}]} {
    %c0 = arith.constant 0 : index
    %c0_0 = arith.constant 0 : index
    %0 = vector.load %arg1[%c0, %c0_0] : memref<16x64xbf16, #tpu.memory_space<vmem>>, vector<16x64xbf16>
    %1 = vector.extract_strided_slice %0 {offsets = [0, 0], sizes = [7, 64], strides = [1, 1]} : vector<16x64xbf16> to vector<7x64xbf16>
    %2 = vector.extract_strided_slice %0 {offsets = [1, 0], sizes = [7, 64], strides = [1, 1]} : vector<16x64xbf16> to vector<7x64xbf16>
    %3 = vector.extract_strided_slice %0 {offsets = [8, 0], sizes = [7, 64], strides = [1, 1]} : vector<16x64xbf16> to vector<7x64xbf16>
    %4 = vector.extract_strided_slice %0 {offsets = [9, 0], sizes = [7, 64], strides = [1, 1]} : vector<16x64xbf16> to vector<7x64xbf16>
    %c0_1 = arith.constant 0 : index
    %c0_2 = arith.constant 0 : index
    %5 = vector.load %arg2[%c0_1, %c0_2] : memref<192x1024xbf16, #tpu.memory_space<vmem>>, vector<64x1024xbf16>
    %c64 = arith.constant 64 : index
    %c0_3 = arith.constant 0 : index
    %6 = vector.load %arg2[%c64, %c0_3] : memref<192x1024xbf16, #tpu.memory_space<vmem>>, vector<64x1024xbf16>
    %c128 = arith.constant 128 : index
    %c0_4 = arith.constant 0 : index
    %7 = vector.load %arg2[%c128, %c0_4] : memref<192x1024xbf16, #tpu.memory_space<vmem>>, vector<64x1024xbf16>
    %cst = arith.constant dense<0.000000e+00> : vector<7x1024xf32>
    %8 = tpu.matmul %1, %5, %cst {dimension_numbers = #tpu.dot_dimension_numbers<[1], [0], [0], [1], [0, 0, 1, 1], [], []>} : vector<7x64xbf16>, vector<64x1024xbf16>, vector<7x1024xf32> -> vector<7x1024xf32>
    %cst_5 = arith.constant dense<0.000000e+00> : vector<7x1024xf32>
    %9 = tpu.matmul %3, %6, %cst_5 {dimension_numbers = #tpu.dot_dimension_numbers<[1], [0], [0], [1], [0, 0, 1, 1], [], []>} : vector<7x64xbf16>, vector<64x1024xbf16>, vector<7x1024xf32> -> vector<7x1024xf32>
    %10 = arith.addf %8, %9 : vector<7x1024xf32>
    %cst_6 = arith.constant dense<0.000000e+00> : vector<7x1024xf32>
    %11 = tpu.matmul %2, %7, %cst_6 {dimension_numbers = #tpu.dot_dimension_numbers<[1], [0], [0], [1], [0, 0, 1, 1], [], []>} : vector<7x64xbf16>, vector<64x1024xbf16>, vector<7x1024xf32> -> vector<7x1024xf32>
    %12 = arith.addf %10, %11 : vector<7x1024xf32>
    %cst_7 = arith.constant dense<0.000000e+00> : vector<7x1024xf32>
    %13 = tpu.matmul %3, %5, %cst_7 {dimension_numbers = #tpu.dot_dimension_numbers<[1], [0], [0], [1], [0, 0, 1, 1], [], []>} : vector<7x64xbf16>, vector<64x1024xbf16>, vector<7x1024xf32> -> vector<7x1024xf32>
    %cst_8 = arith.constant dense<0.000000e+00> : vector<7x1024xf32>
    %14 = tpu.matmul %2, %6, %cst_8 {dimension_numbers = #tpu.dot_dimension_numbers<[1], [0], [0], [1], [0, 0, 1, 1], [], []>} : vector<7x64xbf16>, vector<64x1024xbf16>, vector<7x1024xf32> -> vector<7x1024xf32>
    %15 = arith.addf %13, %14 : vector<7x1024xf32>
    %cst_9 = arith.constant dense<0.000000e+00> : vector<7x1024xf32>
    %16 = tpu.matmul %4, %7, %cst_9 {dimension_numbers = #tpu.dot_dimension_numbers<[1], [0], [0], [1], [0, 0, 1, 1], [], []>} : vector<7x64xbf16>, vector<64x1024xbf16>, vector<7x1024xf32> -> vector<7x1024xf32>
    %17 = arith.addf %15, %16 : vector<7x1024xf32>
    %18 = arith.maximumf %12, %17 : vector<7x1024xf32>
    %19 = vector.extract_strided_slice %18 {offsets = [0, 0], sizes = [7, 512], strides = [1, 1]} : vector<7x1024xf32> to vector<7x512xf32>
    %20 = vector.extract_strided_slice %18 {offsets = [0, 512], sizes = [7, 512], strides = [1, 1]} : vector<7x1024xf32> to vector<7x512xf32>
    %21 = arith.maximumf %19, %20 : vector<7x512xf32>
    %cst_10 = arith.constant 0.000000e+00 : f32
    %22 = vector.broadcast %cst_10 : f32 to vector<7x512xf32>
    %23 = arith.maximumf %21, %22 : vector<7x512xf32>
    %24 = arith.truncf %23 : vector<7x512xf32> to vector<7x512xbf16>
    %25 = vector.extract_strided_slice %24 {offsets = [0, 0], sizes = [6, 512], strides = [1, 1]} : vector<7x512xbf16> to vector<6x512xbf16>
    %c0_11 = arith.constant 0 : index
    %c0_12 = arith.constant 0 : index
    %26 = vector.load %arg3[%c0_11, %c0_12] : memref<1024x192xbf16, #tpu.memory_space<vmem>>, vector<512x192xbf16>
    %cst_13 = arith.constant dense<0.000000e+00> : vector<6x192xf32>
    %27 = tpu.matmul %25, %26, %cst_13 {dimension_numbers = #tpu.dot_dimension_numbers<[1], [0], [0], [1], [0, 0, 1, 1], [], []>} : vector<6x512xbf16>, vector<512x192xbf16>, vector<6x192xf32> -> vector<6x192xf32>
    %28 = vector.extract_strided_slice %24 {offsets = [1, 0], sizes = [6, 512], strides = [1, 1]} : vector<7x512xbf16> to vector<6x512xbf16>
    %c512 = arith.constant 512 : index
    %c0_14 = arith.constant 0 : index
    %29 = vector.load %arg3[%c512, %c0_14] : memref<1024x192xbf16, #tpu.memory_space<vmem>>, vector<512x192xbf16>
    %cst_15 = arith.constant dense<0.000000e+00> : vector<6x192xf32>
    %30 = tpu.matmul %28, %29, %cst_15 {dimension_numbers = #tpu.dot_dimension_numbers<[1], [0], [0], [1], [0, 0, 1, 1], [], []>} : vector<6x512xbf16>, vector<512x192xbf16>, vector<6x192xf32> -> vector<6x192xf32>
    %31 = arith.addf %27, %30 : vector<6x192xf32>
    %c0_16 = arith.constant 0 : index
    %c0_17 = arith.constant 0 : index
    %32 = vector.load %arg4[%c0_16, %c0_17] : memref<1x192xf32, #tpu.memory_space<vmem>>, vector<1x192xf32>
    %33 = vector.broadcast %32 : vector<1x192xf32> to vector<6x192xf32>
    %34 = arith.addf %31, %33 : vector<6x192xf32>
    %cst_18 = arith.constant 0.000000e+00 : f32
    %35 = vector.broadcast %cst_18 : f32 to vector<6x192xf32>
    %36 = arith.maximumf %34, %35 : vector<6x192xf32>
    %c0_19 = arith.constant 0 : index
    %c0_20 = arith.constant 0 : index
    %37 = vector.load %arg5[%c0_19, %c0_20] : memref<12x192xf32, #tpu.memory_space<vmem>>, vector<12x192xf32>
    %38 = vector.extract_strided_slice %37 {offsets = [0, 0], sizes = [6, 192], strides = [1, 1]} : vector<12x192xf32> to vector<6x192xf32>
    %39 = arith.mulf %36, %38 : vector<6x192xf32>
    %40 = vector.shape_cast %39 : vector<6x192xf32> to vector<1x6x192xf32>
    %cst_21 = arith.constant dense<0.000000e+00> : vector<1xf32>
    %41 = vector.multi_reduction <add>, %40, %cst_21 [1, 2] : vector<1x6x192xf32> to vector<1xf32>
    %42 = vector.shape_cast %41 : vector<1xf32> to vector<1x1x1xf32>
    %43 = vector.extract %42[0, 0, 0] : f32 from vector<1x1x1xf32>
    %44 = vector.broadcast %43 : f32 to vector<1x1xf32>
    %45 = vector.extract_strided_slice %37 {offsets = [6, 0], sizes = [6, 192], strides = [1, 1]} : vector<12x192xf32> to vector<6x192xf32>
    %46 = arith.mulf %36, %45 : vector<6x192xf32>
    %47 = vector.shape_cast %46 : vector<6x192xf32> to vector<1x6x192xf32>
    %cst_22 = arith.constant dense<0.000000e+00> : vector<1xf32>
    %48 = vector.multi_reduction <add>, %47, %cst_22 [1, 2] : vector<1x6x192xf32> to vector<1xf32>
    %49 = vector.shape_cast %48 : vector<1xf32> to vector<1x1x1xf32>
    %50 = vector.extract %49[0, 0, 0] : f32 from vector<1x1x1xf32>
    %51 = vector.broadcast %50 : f32 to vector<1x1xf32>
    %52 = tpu.concatenate %44, %51 in 1 : vector<1x1xf32>, vector<1x1xf32> -> vector<1x2xf32>
    %c0_23 = arith.constant 0 : index
    %c0_24 = arith.constant 0 : index
    %53 = vector.load %arg6[%c0_23, %c0_24] : memref<1x2xf32, #tpu.memory_space<vmem>>, vector<1x2xf32>
    %54 = arith.addf %52, %53 : vector<1x2xf32>
    %55 = vector.shape_cast %54 : vector<1x2xf32> to vector<1x1x2xf32>
    %56 = vector.broadcast %55 : vector<1x1x2xf32> to vector<1x8x2xf32>
    %c0_25 = arith.constant 0 : index
    %c0_26 = arith.constant 0 : index
    %c0_27 = arith.constant 0 : index
    %57 = vector.load %arg7[%c0_25, %c0_26, %c0_27] : memref<1x8x2xf32, #tpu.memory_space<vmem>>, vector<1x8x2xf32>
    tpu.vector_store %arg7[%c0_25, %c0_26, %c0_27], %56 {strides = array<i32>} : memref<1x8x2xf32, #tpu.memory_space<vmem>>, vector<1x8x2xf32>,
    return
  }
  func.func @transform_0(%arg0: i32) -> (i32, i32) {
    %c0_i32 = arith.constant 0 : i32
    %c0_i32_0 = arith.constant 0 : i32
    return %arg0, %c0_i32 : i32, i32
  }
  func.func @transform_1(%arg0: i32) -> (i32, i32) {
    %c0_i32 = arith.constant 0 : i32
    %c0_i32_0 = arith.constant 0 : i32
    %c0_i32_1 = arith.constant 0 : i32
    return %c0_i32, %c0_i32_0 : i32, i32
  }
  func.func @transform_2(%arg0: i32) -> (i32, i32) {
    %c0_i32 = arith.constant 0 : i32
    %c0_i32_0 = arith.constant 0 : i32
    %c0_i32_1 = arith.constant 0 : i32
    return %c0_i32, %c0_i32_0 : i32, i32
  }
  func.func @transform_3(%arg0: i32) -> (i32, i32) {
    %c0_i32 = arith.constant 0 : i32
    %c0_i32_0 = arith.constant 0 : i32
    %c0_i32_1 = arith.constant 0 : i32
    return %c0_i32, %c0_i32_0 : i32, i32
  }
  func.func @transform_4(%arg0: i32) -> (i32, i32) {
    %c0_i32 = arith.constant 0 : i32
    %c0_i32_0 = arith.constant 0 : i32
    %c0_i32_1 = arith.constant 0 : i32
    return %c0_i32, %c0_i32_0 : i32, i32
  }
  func.func @transform_5(%arg0: i32) -> (i32, i32) {
    %c0_i32 = arith.constant 0 : i32
    %c0_i32_0 = arith.constant 0 : i32
    %c0_i32_1 = arith.constant 0 : i32
    return %c0_i32, %c0_i32_0 : i32, i32
  }
  func.func @transform_6(%arg0: i32) -> (i32, i32, i32) {
    %c0_i32 = arith.constant 0 : i32
    %c0_i32_0 = arith.constant 0 : i32
    %c0_i32_1 = arith.constant 0 : i32
    return %arg0, %c0_i32, %c0_i32_0 : i32, i32, i32
  }
}

</mosaic_0001>

<llo_original>
// kernel: covnet_forward.1
$region0: #{covnet_forward.1}
  #allocation0 [shape = 'u32[]', space=smem, size = 0x4, offset = 0x4, fixed_abs, tag = 'smem constant byte address 0x4 - core index']
  #allocation1 [shape = 'u32[144,128]{1,0:T(1,128)}', space=vmem, size = 0x12000, scoped, tag = 'internal scratch']
  %s0 = inlined_call_operand.vmem [shape: bf16[32,64], index: 0, kind: input, shape index: {}]
  %s1 = inlined_call_operand.vmem [shape: bf16[192,1024], index: 1, kind: input, shape index: {}]
  %s2 = inlined_call_operand.vmem [shape: bf16[1024,192], index: 2, kind: input, shape index: {}]
  %s3 = inlined_call_operand.vmem [shape: f32[1,192], index: 3, kind: input, shape index: {}]
  %s4 = inlined_call_operand.vmem [shape: f32[12,192], index: 4, kind: input, shape index: {}]
  %s5 = inlined_call_operand.vmem [shape: f32[1,2], index: 5, kind: input, shape index: {}]
  %s6 = inlined_call_operand.vmem [shape: f32[2,8,2], index: 6, kind: output, shape index: {}]
  %s7 = sld [smem:[#allocation0]]
  $region57: #{covnet_forward.1} parent=0
    _
  %s9 = ssub.s32 1, %s7
  %s10 = scalar_select 0, %s9, %s7
  loop: start=0, step=1, limit=4
  $region2: #{covnet_forward.1} parent=0 // loop_pre_header
    _
  $region3: #{covnet_forward.1} parent=0 // loop_header
    %s12 = sphi 0, %s16
    %p13 = scmp.ge.s32.totalorder %s12, 4
    %s22 = sphi 0, %s24
    %s25 = sphi 0, %s22
    %s26 = sphi 0, %s25
    %s42 = sphi 0, %s26
    %s46 = sphi 0, %s46
    %s48 = sphi 0, %s46
    %s49 = sphi 0, %s48
    %s63 = sphi 0, %s49
    %s67 = sphi 0, %s67
    %s69 = sphi 0, %s67
    %s70 = sphi 0, %s69
    %s84 = sphi 0, %s70
    %s88 = sphi 0, %s88
    %s90 = sphi 0, %s88
    %s91 = sphi 0, %s90
    %s105 = sphi 0, %s91
    %s109 = sphi 0, %s109
    %s111 = sphi 0, %s109
    %s112 = sphi 0, %s111
    %s126 = sphi 0, %s112
    %s130 = sphi 0, %s130
    %s132 = sphi 0, %s130
    %s133 = sphi 0, %s132
    %s147 = sphi 0, %s133
    %s153 = sphi 0, %s155
    %s156 = sphi 0, %s153
    %s157 = sphi 0, %s156
    %s173 = sphi 0, %s157
  $region4: #{covnet_forward.1} parent=0 // loop_header_branch
    %15 = sbr.rel (%p13) target = $region8
  $region5: #{covnet_forward.1} parent=0 // loop_body
    %s17 = ssub.s32 %s12, 1
    %s18 = ssub.s32 %s12, 2
    %s19 = sadd.s32 %s12, 1
    %s20 = ssub.s32 %s12, %s19
    %p21 = scmp.eq.s32.totalorder %s20, 0
    %s23 = sadd.s32 %s22, 1
    %s24 = scalar_select %p21, %s22, %s23
    %p27 = pneg %p21
    %p28 = scmp.eq.s32.totalorder %s12, 1
    %p29 = por %p27, %p28
    %p30 = scmp.ne.s32.totalorder %s22, %s25
    %p31 = scmp.eq.s32.totalorder %s12, 0
    %p32 = por %p30, %p31
    %p33 = scmp.ne.s32.totalorder %s22, %s25
    %p34 = scmp.eq.s32.totalorder %s17, 1
    %p35 = por %p33, %p34
    %p36 = scmp.ne.s32.totalorder %s25, %s26
    %p37 = scmp.eq.s32.totalorder %s17, 0
    %p38 = por %p36, %p37
    %p39 = scmp.ne.s32.totalorder %s25, %s26
    %p40 = scmp.eq.s32.totalorder %s18, 1
    %p41 = por %p39, %p40
    %p43 = scmp.ne.s32.totalorder %s26, %s42
    %p44 = scmp.eq.s32.totalorder %s18, 0
    %p45 = por %p43, %p44
    %s47 = sadd.s32 %s46, 1
    %p50 = scmp.eq.s32.totalorder %s12, 1
    %p51 = scmp.ne.s32.totalorder %s46, %s48
    %p52 = scmp.eq.s32.totalorder %s12, 0
    %p53 = por %p51, %p52
    %p54 = scmp.ne.s32.totalorder %s46, %s48
    %p55 = scmp.eq.s32.totalorder %s17, 1
    %p56 = por %p54, %p55
    %p57 = scmp.ne.s32.totalorder %s48, %s49
    %p58 = scmp.eq.s32.totalorder %s17, 0
    %p59 = por %p57, %p58
    %p60 = scmp.ne.s32.totalorder %s48, %s49
    %p61 = scmp.eq.s32.totalorder %s18, 1
    %p62 = por %p60, %p61
    %p64 = scmp.ne.s32.totalorder %s49, %s63
    %p65 = scmp.eq.s32.totalorder %s18, 0
    %p66 = por %p64, %p65
    %s68 = sadd.s32 %s67, 1
    %p71 = scmp.eq.s32.totalorder %s12, 1
    %p72 = scmp.ne.s32.totalorder %s67, %s69
    %p73 = scmp.eq.s32.totalorder %s12, 0
    %p74 = por %p72, %p73
    %p75 = scmp.ne.s32.totalorder %s67, %s69
    %p76 = scmp.eq.s32.totalorder %s17, 1
    %p77 = por %p75, %p76
    %p78 = scmp.ne.s32.totalorder %s69, %s70
    %p79 = scmp.eq.s32.totalorder %s17, 0
    %p80 = por %p78, %p79
    %p81 = scmp.ne.s32.totalorder %s69, %s70
    %p82 = scmp.eq.s32.totalorder %s18, 1
    %p83 = por %p81, %p82
    %p85 = scmp.ne.s32.totalorder %s70, %s84
    %p86 = scmp.eq.s32.totalorder %s18, 0
    %p87 = por %p85, %p86
    %s89 = sadd.s32 %s88, 1
    %p92 = scmp.eq.s32.totalorder %s12, 1
    %p93 = scmp.ne.s32.totalorder %s88, %s90
    %p94 = scmp.eq.s32.totalorder %s12, 0
    %p95 = por %p93, %p94
    %p96 = scmp.ne.s32.totalorder %s88, %s90
    %p97 = scmp.eq.s32.totalorder %s17, 1
    %p98 = por %p96, %p97
    %p99 = scmp.ne.s32.totalorder %s90, %s91
    %p100 = scmp.eq.s32.totalorder %s17, 0
    %p101 = por %p99, %p100
    %p102 = scmp.ne.s32.totalorder %s90, %s91
    %p103 = scmp.eq.s32.totalorder %s18, 1
    %p104 = por %p102, %p103
    %p106 = scmp.ne.s32.totalorder %s91, %s105
    %p107 = scmp.eq.s32.totalorder %s18, 0
    %p108 = por %p106, %p107
    %s110 = sadd.s32 %s109, 1
    %p113 = scmp.eq.s32.totalorder %s12, 1
    %p114 = scmp.ne.s32.totalorder %s109, %s111
    %p115 = scmp.eq.s32.totalorder %s12, 0
    %p116 = por %p114, %p115
    %p117 = scmp.ne.s32.totalorder %s109, %s111
    %p118 = scmp.eq.s32.totalorder %s17, 1
    %p119 = por %p117, %p118
    %p120 = scmp.ne.s32.totalorder %s111, %s112
    %p121 = scmp.eq.s32.totalorder %s17, 0
    %p122 = por %p120, %p121
    %p123 = scmp.ne.s32.totalorder %s111, %s112
    %p124 = scmp.eq.s32.totalorder %s18, 1
    %p125 = por %p123, %p124
    %p127 = scmp.ne.s32.totalorder %s112, %s126
    %p128 = scmp.eq.s32.totalorder %s18, 0
    %p129 = por %p127, %p128
    %s131 = sadd.s32 %s130, 1
    %p134 = scmp.eq.s32.totalorder %s12, 1
    %p135 = scmp.ne.s32.totalorder %s130, %s132
    %p136 = scmp.eq.s32.totalorder %s12, 0
    %p137 = por %p135, %p136
    %p138 = scmp.ne.s32.totalorder %s130, %s132
    %p139 = scmp.eq.s32.totalorder %s17, 1
    %p140 = por %p138, %p139
    %p141 = scmp.ne.s32.totalorder %s132, %s133
    %p142 = scmp.eq.s32.totalorder %s17, 0
    %p143 = por %p141, %p142
    %p144 = scmp.ne.s32.totalorder %s132, %s133
    %p145 = scmp.eq.s32.totalorder %s18, 1
    %p146 = por %p144, %p145
    %p148 = scmp.ne.s32.totalorder %s133, %s147
    %p149 = scmp.eq.s32.totalorder %s18, 0
    %p150 = por %p148, %p149
    %s151 = ssub.s32 %s12, %s19
    %p152 = scmp.eq.s32.totalorder %s151, 0
    %s154 = sadd.s32 %s153, 1
    %s155 = scalar_select %p152, %s153, %s154
    %p158 = pneg %p152
    %p159 = scmp.eq.s32.totalorder %s12, 1
    %p160 = por %p158, %p159
    %p161 = scmp.ne.s32.totalorder %s153, %s156
    %p162 = scmp.eq.s32.totalorder %s12, 0
    %p163 = por %p161, %p162
    %p164 = scmp.ne.s32.totalorder %s153, %s156
    %p165 = scmp.eq.s32.totalorder %s17, 1
    %p166 = por %p164, %p165
    %p167 = scmp.ne.s32.totalorder %s156, %s157
    %p168 = scmp.eq.s32.totalorder %s17, 0
    %p169 = por %p167, %p168
    %p170 = scmp.ne.s32.totalorder %s156, %s157
    %p171 = scmp.eq.s32.totalorder %s18, 1
    %p172 = por %p170, %p171
    %p174 = scmp.ne.s32.totalorder %s157, %s173
    %p175 = scmp.eq.s32.totalorder %s18, 0
    %p176 = por %p174, %p175
    %p177 = scmp.le.s32.totalorder 1, %s12
    %p178 = scmp.lt.s32.totalorder %s12, 3
    %p179 = pnand %p177, %p178
    %p180 = pneg %p179
    // Predicated region
    $region9: #{covnet_forward.1} parent=5 // pred_check
      _
    $region10: #{covnet_forward.1} parent=5 // pred_check_branch
      %182 = sbr.rel (%p179) target = $region12
    $region11: #{covnet_forward.1} parent=5 // pred_region
      %s183 = ssub.s32 %s12, 1
      // Predicated region
      $region13: #{covnet_forward.1} parent=11 // pred_check
        %p184 = pneg %p59
      $region14: #{covnet_forward.1} parent=11 // pred_check_branch
        %186 = sbr.rel (%p184) target = $region16
      $region15: #{covnet_forward.1} parent=11 // pred_region
        _
      $region16: #{covnet_forward.1} parent=11 // pred_fallthru
        _
      // Predicated region
      $region17: #{covnet_forward.1} parent=11 // pred_check
        %p187 = pneg %p80
      $region18: #{covnet_forward.1} parent=11 // pred_check_branch
        %189 = sbr.rel (%p187) target = $region20
      $region19: #{covnet_forward.1} parent=11 // pred_region
        _
      $region20: #{covnet_forward.1} parent=11 // pred_fallthru
        _
      // Predicated region
      $region21: #{covnet_forward.1} parent=11 // pred_check
        %p190 = pneg %p101
      $region22: #{covnet_forward.1} parent=11 // pred_check_branch
        %192 = sbr.rel (%p190) target = $region24
      $region23: #{covnet_forward.1} parent=11 // pred_region
        _
      $region24: #{covnet_forward.1} parent=11 // pred_fallthru
        _
      // Predicated region
      $region25: #{covnet_forward.1} parent=11 // pred_check
        %p193 = pneg %p122
      $region26: #{covnet_forward.1} parent=11 // pred_check_branch
        %195 = sbr.rel (%p193) target = $region28
      $region27: #{covnet_forward.1} parent=11 // pred_region
        _
      $region28: #{covnet_forward.1} parent=11 // pred_fallthru
        _
      // Predicated region
      $region29: #{covnet_forward.1} parent=11 // pred_check
        %p196 = pneg %p143
      $region30: #{covnet_forward.1} parent=11 // pred_check_branch
        %198 = sbr.rel (%p196) target = $region32
      $region31: #{covnet_forward.1} parent=11 // pred_region
        _
      $region32: #{covnet_forward.1} parent=11 // pred_fallthru
        _
    $region12: #{covnet_forward.1} parent=5 // pred_fallthru
      _
    %p199 = scmp.lt.s32.totalorder %s12, 2
    // Predicated region
    $region33: #{covnet_forward.1} parent=5 // pred_check
      %p200 = pneg %p199
    $region34: #{covnet_forward.1} parent=5 // pred_check_branch
      %202 = sbr.rel (%p200) target = $region36
    $region35: #{covnet_forward.1} parent=5 // pred_region
      // Predicated region
      $region37: #{covnet_forward.1} parent=35 // pred_check
        %p203 = pneg %p32
      $region38: #{covnet_forward.1} parent=35 // pred_check_branch
        %205 = sbr.rel (%p203) target = $region40
      $region39: #{covnet_forward.1} parent=35 // pred_region
        %s206 = smul.u32 2, %s12
        %p207 = scmp.lt.s32.totalorder %s206, 3
        %s208 = scalar_select %p207, %s206, 3
        %s209 = smul.addr %s208, 4
        %s210 = scalar_lea.vmem %s0, %s209
        %s211 = smul.u32 2, %s12
      $region40: #{covnet_forward.1} parent=35 // pred_fallthru
        _
    $region36: #{covnet_forward.1} parent=5 // pred_fallthru
      _
    %p212 = scmp.le.s32.totalorder 1, %s12
    %p213 = scmp.lt.s32.totalorder %s12, 3
    %p214 = pnand %p212, %p213
    %p215 = pneg %p214
    // Predicated region
    $region41: #{covnet_forward.1} parent=5 // pred_check
      _
    $region42: #{covnet_forward.1} parent=5 // pred_check_branch
      %217 = sbr.rel (%p214) target = $region44
    $region43: #{covnet_forward.1} parent=5 // pred_region
      %s218 = ssub.s32 %s12, 1
      %s219 = smul.u32 2, %s17
      %p220 = scmp.lt.s32.totalorder %s219, 3
      %s221 = scalar_select %p220, %s219, 3
      %s222 = smul.addr %s221, 4
      %s223 = scalar_lea.vmem %s0, %s222
      %p224 = pneg %p38
      %p225 = pneg %p35
      %p226 = pneg %p59
      %p227 = pneg %p56
      %p228 = pneg %p80
      %p229 = pneg %p77
      %p230 = pneg %p101
      %p231 = pneg %p98
      %p232 = pneg %p122
      %p233 = pneg %p119
      %p234 = pneg %p143
      %p235 = pneg %p140
      %p236 = pneg %p169
      %p237 = pneg %p166
      %p238 = scmp.lt.s32.totalorder %s17, 1
      %s239 = scalar_select %p238, %s17, 1
      %s240 = smul.addr %s239, 8
      %s241 = scalar_lea.vmem %s6, %s240
      %s242 = smul.u32 2, %s17
      %p243 = scmp.lt.s32.totalorder %s242, 3
      %s244 = scalar_select %p243, %s242, 3
      %s245 = smul.addr %s244, 4
      %s246 = scalar_lea.vmem %s0, %s245
      %s247 = smul.u32 2, %s17
      %p248 = scmp.lt.s32.totalorder %s17, 1
      %s249 = scalar_select %p248, %s17, 1
      %s250 = smul.addr %s249, 8
      %s251 = scalar_lea.vmem %s6, %s250
      %v253 = vld [vmem:[%s246] sm:$0xf]
      %v254 = vld [vmem:[%s246 + $0x4] sm:$0xf]
      %v255 = vld [vmem:[%s1] sm:$0xff]
      %v256 = vld [vmem:[%s1 + $0x8] sm:$0xff]
      %v257 = vld [vmem:[%s1 + $0x10] sm:$0xff]
      %v258 = vld [vmem:[%s1 + $0x18] sm:$0xff]
      %v259 = vld [vmem:[%s1 + $0x20] sm:$0xff]
      %v260 = vld [vmem:[%s1 + $0x28] sm:$0xff]
      %v261 = vld [vmem:[%s1 + $0x30] sm:$0xff]
      %v262 = vld [vmem:[%s1 + $0x38] sm:$0xff]
      %v263 = vld [vmem:[%s1 + $0x40] sm:$0xff]
      %v264 = vld [vmem:[%s1 + $0x48] sm:$0xff]
      %v265 = vld [vmem:[%s1 + $0x50] sm:$0xff]
      %v266 = vld [vmem:[%s1 + $0x58] sm:$0xff]
      %v267 = vld [vmem:[%s1 + $0x60] sm:$0xff]
      %v268 = vld [vmem:[%s1 + $0x68] sm:$0xff]
      %v269 = vld [vmem:[%s1 + $0x70] sm:$0xff]
      %v270 = vld [vmem:[%s1 + $0x78] sm:$0xff]
      %v271 = vld [vmem:[%s1 + $0x80] sm:$0xff]
      %v272 = vld [vmem:[%s1 + $0x88] sm:$0xff]
      %v273 = vld [vmem:[%s1 + $0x90] sm:$0xff]
      %v274 = vld [vmem:[%s1 + $0x98] sm:$0xff]
      %v275 = vld [vmem:[%s1 + $0xa0] sm:$0xff]
      %v276 = vld [vmem:[%s1 + $0xa8] sm:$0xff]
      %v277 = vld [vmem:[%s1 + $0xb0] sm:$0xff]
      %v278 = vld [vmem:[%s1 + $0xb8] sm:$0xff]
      %v279 = vld [vmem:[%s1 + $0xc0] sm:$0xff]
      %v280 = vld [vmem:[%s1 + $0xc8] sm:$0xff]
      %v281 = vld [vmem:[%s1 + $0xd0] sm:$0xff]
      %v282 = vld [vmem:[%s1 + $0xd8] sm:$0xff]
      %v283 = vld [vmem:[%s1 + $0xe0] sm:$0xff]
      %v284 = vld [vmem:[%s1 + $0xe8] sm:$0xff]
      %v285 = vld [vmem:[%s1 + $0xf0] sm:$0xff]
      %v286 = vld [vmem:[%s1 + $0xf8] sm:$0xff]
      %v287 = vld [vmem:[%s1 + $0x100] sm:$0xff]
      %v288 = vld [vmem:[%s1 + $0x108] sm:$0xff]
      %v289 = vld [vmem:[%s1 + $0x110] sm:$0xff]
      %v290 = vld [vmem:[%s1 + $0x118] sm:$0xff]
      %v291 = vld [vmem:[%s1 + $0x120] sm:$0xff]
      %v292 = vld [vmem:[%s1 + $0x128] sm:$0xff]
      %v293 = vld [vmem:[%s1 + $0x130] sm:$0xff]
      %v294 = vld [vmem:[%s1 + $0x138] sm:$0xff]
      %v295 = vld [vmem:[%s1 + $0x140] sm:$0xff]
      %v296 = vld [vmem:[%s1 + $0x148] sm:$0xff]
      %v297 = vld [vmem:[%s1 + $0x150] sm:$0xff]
      %v298 = vld [vmem:[%s1 + $0x158] sm:$0xff]
      %v299 = vld [vmem:[%s1 + $0x160] sm:$0xff]
      %v300 = vld [vmem:[%s1 + $0x168] sm:$0xff]
      %v301 = vld [vmem:[%s1 + $0x170] sm:$0xff]
      %v302 = vld [vmem:[%s1 + $0x178] sm:$0xff]
      %v303 = vld [vmem:[%s1 + $0x180] sm:$0xff]
      %v304 = vld [vmem:[%s1 + $0x188] sm:$0xff]
      %v305 = vld [vmem:[%s1 + $0x190] sm:$0xff]
      %v306 = vld [vmem:[%s1 + $0x198] sm:$0xff]
      %v307 = vld [vmem:[%s1 + $0x1a0] sm:$0xff]
      %v308 = vld [vmem:[%s1 + $0x1a8] sm:$0xff]
      %v309 = vld [vmem:[%s1 + $0x1b0] sm:$0xff]
      %v310 = vld [vmem:[%s1 + $0x1b8] sm:$0xff]
      %v311 = vld [vmem:[%s1 + $0x1c0] sm:$0xff]
      %v312 = vld [vmem:[%s1 + $0x1c8] sm:$0xff]
      %v313 = vld [vmem:[%s1 + $0x1d0] sm:$0xff]
      %v314 = vld [vmem:[%s1 + $0x1d8] sm:$0xff]
      %v315 = vld [vmem:[%s1 + $0x1e0] sm:$0xff]
      %v316 = vld [vmem:[%s1 + $0x1e8] sm:$0xff]
      %v317 = vld [vmem:[%s1 + $0x1f0] sm:$0xff]
      %v318 = vld [vmem:[%s1 + $0x1f8] sm:$0xff]
      %v319 = vld [vmem:[%s1 + $0x200] sm:$0xff]
      %v320 = vld [vmem:[%s1 + $0x208] sm:$0xff]
      %v321 = vld [vmem:[%s1 + $0x210] sm:$0xff]
      %v322 = vld [vmem:[%s1 + $0x218] sm:$0xff]
      %v323 = vld [vmem:[%s1 + $0x220] sm:$0xff]
      %v324 = vld [vmem:[%s1 + $0x228] sm:$0xff]
      %v325 = vld [vmem:[%s1 + $0x230] sm:$0xff]
      %v326 = vld [vmem:[%s1 + $0x238] sm:$0xff]
      %v327 = vld [vmem:[%s1 + $0x240] sm:$0xff]
      %v328 = vld [vmem:[%s1 + $0x248] sm:$0xff]
      %v329 = vld [vmem:[%s1 + $0x250] sm:$0xff]
      %v330 = vld [vmem:[%s1 + $0x258] sm:$0xff]
      %v331 = vld [vmem:[%s1 + $0x260] sm:$0xff]
      %v332 = vld [vmem:[%s1 + $0x268] sm:$0xff]
      %v333 = vld [vmem:[%s1 + $0x270] sm:$0xff]
      %v334 = vld [vmem:[%s1 + $0x278] sm:$0xff]
      %v335 = vld [vmem:[%s1 + $0x280] sm:$0xff]
      %v336 = vld [vmem:[%s1 + $0x288] sm:$0xff]
      %v337 = vld [vmem:[%s1 + $0x290] sm:$0xff]
      %v338 = vld [vmem:[%s1 + $0x298] sm:$0xff]
      %v339 = vld [vmem:[%s1 + $0x2a0] sm:$0xff]
      %v340 = vld [vmem:[%s1 + $0x2a8] sm:$0xff]
      %v341 = vld [vmem:[%s1 + $0x2b0] sm:$0xff]
      %v342 = vld [vmem:[%s1 + $0x2b8] sm:$0xff]
      %v343 = vld [vmem:[%s1 + $0x2c0] sm:$0xff]
      %v344 = vld [vmem:[%s1 + $0x2c8] sm:$0xff]
      %v345 = vld [vmem:[%s1 + $0x2d0] sm:$0xff]
      %v346 = vld [vmem:[%s1 + $0x2d8] sm:$0xff]
      %v347 = vld [vmem:[%s1 + $0x2e0] sm:$0xff]
      %v348 = vld [vmem:[%s1 + $0x2e8] sm:$0xff]
      %v349 = vld [vmem:[%s1 + $0x2f0] sm:$0xff]
      %v350 = vld [vmem:[%s1 + $0x2f8] sm:$0xff]
      %v383 = vunpack.c.l.b16 %v287
      %v384 = vunpack.c.h.b16 %v287
      %v385 = vunpack.c.l.b16 %v288
      %v386 = vunpack.c.h.b16 %v288
      %v387 = vunpack.c.l.b16 %v289
      %v388 = vunpack.c.h.b16 %v289
      %v389 = vunpack.c.l.b16 %v290
      %v390 = vunpack.c.h.b16 %v290
      %v391 = vunpack.c.l.b16 %v291
      %v392 = vunpack.c.h.b16 %v291
      %v393 = vunpack.c.l.b16 %v292
      %v394 = vunpack.c.h.b16 %v292
      %v395 = vunpack.c.l.b16 %v293
      %v396 = vunpack.c.h.b16 %v293
      %v397 = vunpack.c.l.b16 %v294
      %v398 = vunpack.c.h.b16 %v294
      %v399 = vunpack.c.l.b16 %v295
      %v400 = vunpack.c.h.b16 %v295
      %v401 = vunpack.c.l.b16 %v296
      %v402 = vunpack.c.h.b16 %v296
      %v403 = vunpack.c.l.b16 %v297
      %v404 = vunpack.c.h.b16 %v297
      %v405 = vunpack.c.l.b16 %v298
      %v406 = vunpack.c.h.b16 %v298
      %v407 = vunpack.c.l.b16 %v299
      %v408 = vunpack.c.h.b16 %v299
      %v409 = vunpack.c.l.b16 %v300
      %v410 = vunpack.c.h.b16 %v300
      %v411 = vunpack.c.l.b16 %v301
      %v412 = vunpack.c.h.b16 %v301
      %v413 = vunpack.c.l.b16 %v302
      %v414 = vunpack.c.h.b16 %v302
      %v415 = vunpack.c.l.b16 %v303
      %v416 = vunpack.c.h.b16 %v303
      %v417 = vunpack.c.l.b16 %v304
      %v418 = vunpack.c.h.b16 %v304
      %v419 = vunpack.c.l.b16 %v305
      %v420 = vunpack.c.h.b16 %v305
      %v421 = vunpack.c.l.b16 %v306
      %v422 = vunpack.c.h.b16 %v306
      %v423 = vunpack.c.l.b16 %v307
      %v424 = vunpack.c.h.b16 %v307
      %v425 = vunpack.c.l.b16 %v308
      %v426 = vunpack.c.h.b16 %v308
      %v427 = vunpack.c.l.b16 %v309
      %v428 = vunpack.c.h.b16 %v309
      %v429 = vunpack.c.l.b16 %v310
      %v430 = vunpack.c.h.b16 %v310
      %v431 = vunpack.c.l.b16 %v311
      %v432 = vunpack.c.h.b16 %v311
      %v433 = vunpack.c.l.b16 %v312
      %v434 = vunpack.c.h.b16 %v312
      %v435 = vunpack.c.l.b16 %v313
      %v436 = vunpack.c.h.b16 %v313
      %v437 = vunpack.c.l.b16 %v314
      %v438 = vunpack.c.h.b16 %v314
      %v439 = vunpack.c.l.b16 %v315
      %v440 = vunpack.c.h.b16 %v315
      %v441 = vunpack.c.l.b16 %v316
      %v442 = vunpack.c.h.b16 %v316
      %v443 = vunpack.c.l.b16 %v317
      %v444 = vunpack.c.h.b16 %v317
      %v445 = vunpack.c.l.b16 %v318
      %v446 = vunpack.c.h.b16 %v318
      %v447 = vpack.c.b16 %v391, %v383
      %v448 = vpack.c.b16 %v392, %v384
      %v449 = vpack.c.b16 %v393, %v385
      %v450 = vpack.c.b16 %v394, %v386
      %v451 = vpack.c.b16 %v395, %v387
      %v452 = vpack.c.b16 %v396, %v388
      %v453 = vpack.c.b16 %v397, %v389
      %v454 = vpack.c.b16 %v398, %v390
      %v455 = vpack.c.b16 %v407, %v399
      %v456 = vpack.c.b16 %v408, %v400
      %v457 = vpack.c.b16 %v409, %v401
      %v458 = vpack.c.b16 %v410, %v402
      %v459 = vpack.c.b16 %v411, %v403
      %v460 = vpack.c.b16 %v412, %v404
      %v461 = vpack.c.b16 %v413, %v405
      %v462 = vpack.c.b16 %v414, %v406
      %v463 = vpack.c.b16 %v423, %v415
      %v464 = vpack.c.b16 %v424, %v416
      %v465 = vpack.c.b16 %v425, %v417
      %v466 = vpack.c.b16 %v426, %v418
      %v467 = vpack.c.b16 %v427, %v419
      %v468 = vpack.c.b16 %v428, %v420
      %v469 = vpack.c.b16 %v429, %v421
      %v470 = vpack.c.b16 %v430, %v422
      %v471 = vpack.c.b16 %v439, %v431
      %v472 = vpack.c.b16 %v440, %v432
      %v473 = vpack.c.b16 %v441, %v433
      %v474 = vpack.c.b16 %v442, %v434
      %v475 = vpack.c.b16 %v443, %v435
      %v476 = vpack.c.b16 %v444, %v436
      %v477 = vpack.c.b16 %v445, %v437
      %v478 = vpack.c.b16 %v446, %v438
      %vm511 = vcmask 523264
      %v513 = vsel %vm511, %v254, 0
      %515 = vmatprep.subr.bf16.mxu0 %v448
      %516 = vmatpush1.bf16.msra.mxu0 %v447
      %517 = vmatprep.subr.bf16.mxu0 %v456
      %518 = vmatpush1.bf16.msra.mxu0 %v455
      %519 = vmatprep.subr.bf16.mxu0 %v464
      %520 = vmatpush1.bf16.msra.mxu0 %v463
      %521 = vmatprep.subr.bf16.mxu0 %v472
      %522 = vmatpush1.bf16.msra.mxu0 %v471
      %523 = vmatprep.subr.bf16.mxu0 0
      %524 = vmatpush1.bf16.msra.mxu0 0
      %525 = vmatprep.subr.bf16.mxu0 0
      %526 = vmatpush1.bf16.msra.mxu0 0
      %527 = vmatprep.subr.bf16.mxu0 0
      %528 = vmatpush1.bf16.msra.mxu0 0
      %529 = vmatprep.subr.bf16.mxu0 0
      %530 = vmatpush1.bf16.msra.mxu0 0
      %531 = vmatprep.subr.bf16.mxu0 0
      %532 = vmatpush1.bf16.msra.mxu0 0
      %533 = vmatprep.subr.bf16.mxu0 0
      %534 = vmatpush1.bf16.msra.mxu0 0
      %535 = vmatprep.subr.bf16.mxu0 0
      %536 = vmatpush1.bf16.msra.mxu0 0
      %537 = vmatprep.subr.bf16.mxu0 0
      %538 = vmatpush1.bf16.msra.mxu0 0
      %539 = vmatprep.subr.bf16.mxu0 0
      %540 = vmatpush1.bf16.msra.mxu0 0
      %541 = vmatprep.subr.bf16.mxu0 0
      %542 = vmatpush1.bf16.msra.mxu0 0
      %543 = vmatprep.subr.bf16.mxu0 0
      %544 = vmatpush1.bf16.msra.mxu0 0
      %545 = vmatprep.subr.bf16.mxu0 0
      %546 = vmatpush1.bf16.msra.mxu0 0
      %547 = vmatprep.mubr.bf16.mxu0 0
      %548 = vmatmul.mubr.bf16.gmra.mrb[0].mxu0 %v513
      %v549 = vpop.f32.mrb[0].mxu0
      %v550 = vadd.f32 0.0, %v549
      %v551 = vpop.f32.mrb[0].mxu0
      %v552 = vadd.f32 0.0, %v551
      %v553 = vpop.f32.mrb[0].mxu0
      %v554 = vpop.f32.mrb[0].mxu0
      %555 = vdwg.mxu0
      %556 = vmatprep.subr.bf16.mxu0 %v450
      %557 = vmatpush1.bf16.msra.mxu0 %v449
      %558 = vmatprep.subr.bf16.mxu0 %v458
      %559 = vmatpush1.bf16.msra.mxu0 %v457
      %560 = vmatprep.subr.bf16.mxu0 %v466
      %561 = vmatpush1.bf16.msra.mxu0 %v465
      %562 = vmatprep.subr.bf16.mxu0 %v474
      %563 = vmatpush1.bf16.msra.mxu0 %v473
      %564 = vmatprep.subr.bf16.mxu0 0
      %565 = vmatpush1.bf16.msra.mxu0 0
      %566 = vmatprep.subr.bf16.mxu0 0
      %567 = vmatpush1.bf16.msra.mxu0 0
      %568 = vmatprep.subr.bf16.mxu0 0
      %569 = vmatpush1.bf16.msra.mxu0 0
      %570 = vmatprep.subr.bf16.mxu0 0
      %571 = vmatpush1.bf16.msra.mxu0 0
      %572 = vmatprep.subr.bf16.mxu0 0
      %573 = vmatpush1.bf16.msra.mxu0 0
      %574 = vmatprep.subr.bf16.mxu0 0
      %575 = vmatpush1.bf16.msra.mxu0 0
      %576 = vmatprep.subr.bf16.mxu0 0
      %577 = vmatpush1.bf16.msra.mxu0 0
      %578 = vmatprep.subr.bf16.mxu0 0
      %579 = vmatpush1.bf16.msra.mxu0 0
      %580 = vmatprep.subr.bf16.mxu0 0
      %581 = vmatpush1.bf16.msra.mxu0 0
      %582 = vmatprep.subr.bf16.mxu0 0
      %583 = vmatpush1.bf16.msra.mxu0 0
      %584 = vmatprep.subr.bf16.mxu0 0
      %585 = vmatpush1.bf16.msra.mxu0 0
      %586 = vmatprep.subr.bf16.mxu0 0
      %587 = vmatpush1.bf16.msra.mxu0 0
      %588 = vmatprep.mubr.bf16.mxu0 0
      %589 = vmatmul.mubr.bf16.gmra.mrb[0].mxu0 %v513
      %v590 = vpop.f32.mrb[0].mxu0
      %v591 = vadd.f32 0.0, %v590
      %v592 = vpop.f32.mrb[0].mxu0
      %v593 = vadd.f32 0.0, %v592
      %v594 = vpop.f32.mrb[0].mxu0
      %v595 = vpop.f32.mrb[0].mxu0
      %596 = vdwg.mxu0
      %597 = vmatprep.subr.bf16.mxu0 %v452
      %598 = vmatpush1.bf16.msra.mxu0 %v451
      %599 = vmatprep.subr.bf16.mxu0 %v460
      %600 = vmatpush1.bf16.msra.mxu0 %v459
      %601 = vmatprep.subr.bf16.mxu0 %v468
      %602 = vmatpush1.bf16.msra.mxu0 %v467
      %603 = vmatprep.subr.bf16.mxu0 %v476
      %604 = vmatpush1.bf16.msra.mxu0 %v475
      %605 = vmatprep.subr.bf16.mxu0 0
      %606 = vmatpush1.bf16.msra.mxu0 0
      %607 = vmatprep.subr.bf16.mxu0 0
      %608 = vmatpush1.bf16.msra.mxu0 0
      %609 = vmatprep.subr.bf16.mxu0 0
      %610 = vmatpush1.bf16.msra.mxu0 0
      %611 = vmatprep.subr.bf16.mxu0 0
      %612 = vmatpush1.bf16.msra.mxu0 0
      %613 = vmatprep.subr.bf16.mxu0 0
      %614 = vmatpush1.bf16.msra.mxu0 0
      %615 = vmatprep.subr.bf16.mxu0 0
      %616 = vmatpush1.bf16.msra.mxu0 0
      %617 = vmatprep.subr.bf16.mxu0 0
      %618 = vmatpush1.bf16.msra.mxu0 0
      %619 = vmatprep.subr.bf16.mxu0 0
      %620 = vmatpush1.bf16.msra.mxu0 0
      %621 = vmatprep.subr.bf16.mxu0 0
      %622 = vmatpush1.bf16.msra.mxu0 0
      %623 = vmatprep.subr.bf16.mxu0 0
      %624 = vmatpush1.bf16.msra.mxu0 0
      %625 = vmatprep.subr.bf16.mxu0 0
      %626 = vmatpush1.bf16.msra.mxu0 0
      %627 = vmatprep.subr.bf16.mxu0 0
      %628 = vmatpush1.bf16.msra.mxu0 0
      %629 = vmatprep.mubr.bf16.mxu0 0
      %630 = vmatmul.mubr.bf16.gmra.mrb[0].mxu0 %v513
      %v631 = vpop.f32.mrb[0].mxu0
      %v632 = vadd.f32 0.0, %v631
      %v633 = vpop.f32.mrb[0].mxu0
      %v634 = vadd.f32 0.0, %v633
      %v635 = vpop.f32.mrb[0].mxu0
      %v636 = vpop.f32.mrb[0].mxu0
      %637 = vdwg.mxu0
      %638 = vmatprep.subr.bf16.mxu0 %v454
      %639 = vmatpush1.bf16.msra.mxu0 %v453
      %640 = vmatprep.subr.bf16.mxu0 %v462
      %641 = vmatpush1.bf16.msra.mxu0 %v461
      %642 = vmatprep.subr.bf16.mxu0 %v470
      %643 = vmatpush1.bf16.msra.mxu0 %v469
      %644 = vmatprep.subr.bf16.mxu0 %v478
      %645 = vmatpush1.bf16.msra.mxu0 %v477
      %646 = vmatprep.subr.bf16.mxu0 0
      %647 = vmatpush1.bf16.msra.mxu0 0
      %648 = vmatprep.subr.bf16.mxu0 0
      %649 = vmatpush1.bf16.msra.mxu0 0
      %650 = vmatprep.subr.bf16.mxu0 0
      %651 = vmatpush1.bf16.msra.mxu0 0
      %652 = vmatprep.subr.bf16.mxu0 0
      %653 = vmatpush1.bf16.msra.mxu0 0
      %654 = vmatprep.subr.bf16.mxu0 0
      %655 = vmatpush1.bf16.msra.mxu0 0
      %656 = vmatprep.subr.bf16.mxu0 0
      %657 = vmatpush1.bf16.msra.mxu0 0
      %658 = vmatprep.subr.bf16.mxu0 0
      %659 = vmatpush1.bf16.msra.mxu0 0
      %660 = vmatprep.subr.bf16.mxu0 0
      %661 = vmatpush1.bf16.msra.mxu0 0
      %662 = vmatprep.subr.bf16.mxu0 0
      %663 = vmatpush1.bf16.msra.mxu0 0
      %664 = vmatprep.subr.bf16.mxu0 0
      %665 = vmatpush1.bf16.msra.mxu0 0
      %666 = vmatprep.subr.bf16.mxu0 0
      %667 = vmatpush1.bf16.msra.mxu0 0
      %668 = vmatprep.subr.bf16.mxu0 0
      %669 = vmatpush1.bf16.msra.mxu0 0
      %670 = vmatprep.mubr.bf16.mxu0 0
      %671 = vmatmul.mubr.bf16.gmra.mrb[0].mxu0 %v513
      %v672 = vpop.f32.mrb[0].mxu0
      %v673 = vadd.f32 0.0, %v672
      %v674 = vpop.f32.mrb[0].mxu0
      %v675 = vadd.f32 0.0, %v674
      %v676 = vpop.f32.mrb[0].mxu0
      %v677 = vpop.f32.mrb[0].mxu0
      %678 = vdwg.mxu0
      %v711 = vunpack.c.l.b16 %v255
      %v712 = vunpack.c.h.b16 %v255
      %v713 = vunpack.c.l.b16 %v256
      %v714 = vunpack.c.h.b16 %v256
      %v715 = vunpack.c.l.b16 %v257
      %v716 = vunpack.c.h.b16 %v257
      %v717 = vunpack.c.l.b16 %v258
      %v718 = vunpack.c.h.b16 %v258
      %v719 = vunpack.c.l.b16 %v259
      %v720 = vunpack.c.h.b16 %v259
      %v721 = vunpack.c.l.b16 %v260
      %v722 = vunpack.c.h.b16 %v260
      %v723 = vunpack.c.l.b16 %v261
      %v724 = vunpack.c.h.b16 %v261
      %v725 = vunpack.c.l.b16 %v262
      %v726 = vunpack.c.h.b16 %v262
      %v727 = vunpack.c.l.b16 %v263
      %v728 = vunpack.c.h.b16 %v263
      %v729 = vunpack.c.l.b16 %v264
      %v730 = vunpack.c.h.b16 %v264
      %v731 = vunpack.c.l.b16 %v265
      %v732 = vunpack.c.h.b16 %v265
      %v733 = vunpack.c.l.b16 %v266
      %v734 = vunpack.c.h.b16 %v266
      %v735 = vunpack.c.l.b16 %v267
      %v736 = vunpack.c.h.b16 %v267
      %v737 = vunpack.c.l.b16 %v268
      %v738 = vunpack.c.h.b16 %v268
      %v739 = vunpack.c.l.b16 %v269
      %v740 = vunpack.c.h.b16 %v269
      %v741 = vunpack.c.l.b16 %v270
      %v742 = vunpack.c.h.b16 %v270
      %v743 = vunpack.c.l.b16 %v271
      %v744 = vunpack.c.h.b16 %v271
      %v745 = vunpack.c.l.b16 %v272
      %v746 = vunpack.c.h.b16 %v272
      %v747 = vunpack.c.l.b16 %v273
      %v748 = vunpack.c.h.b16 %v273
      %v749 = vunpack.c.l.b16 %v274
      %v750 = vunpack.c.h.b16 %v274
      %v751 = vunpack.c.l.b16 %v275
      %v752 = vunpack.c.h.b16 %v275
      %v753 = vunpack.c.l.b16 %v276
      %v754 = vunpack.c.h.b16 %v276
      %v755 = vunpack.c.l.b16 %v277
      %v756 = vunpack.c.h.b16 %v277
      %v757 = vunpack.c.l.b16 %v278
      %v758 = vunpack.c.h.b16 %v278
      %v759 = vunpack.c.l.b16 %v279
      %v760 = vunpack.c.h.b16 %v279
      %v761 = vunpack.c.l.b16 %v280
      %v762 = vunpack.c.h.b16 %v280
      %v763 = vunpack.c.l.b16 %v281
      %v764 = vunpack.c.h.b16 %v281
      %v765 = vunpack.c.l.b16 %v282
      %v766 = vunpack.c.h.b16 %v282
      %v767 = vunpack.c.l.b16 %v283
      %v768 = vunpack.c.h.b16 %v283
      %v769 = vunpack.c.l.b16 %v284
      %v770 = vunpack.c.h.b16 %v284
      %v771 = vunpack.c.l.b16 %v285
      %v772 = vunpack.c.h.b16 %v285
      %v773 = vunpack.c.l.b16 %v286
      %v774 = vunpack.c.h.b16 %v286
      %v775 = vpack.c.b16 %v719, %v711
      %v776 = vpack.c.b16 %v720, %v712
      %v777 = vpack.c.b16 %v721, %v713
      %v778 = vpack.c.b16 %v722, %v714
      %v779 = vpack.c.b16 %v723, %v715
      %v780 = vpack.c.b16 %v724, %v716
      %v781 = vpack.c.b16 %v725, %v717
      %v782 = vpack.c.b16 %v726, %v718
      %v783 = vpack.c.b16 %v735, %v727
      %v784 = vpack.c.b16 %v736, %v728
      %v785 = vpack.c.b16 %v737, %v729
      %v786 = vpack.c.b16 %v738, %v730
      %v787 = vpack.c.b16 %v739, %v731
      %v788 = vpack.c.b16 %v740, %v732
      %v789 = vpack.c.b16 %v741, %v733
      %v790 = vpack.c.b16 %v742, %v734
      %v791 = vpack.c.b16 %v751, %v743
      %v792 = vpack.c.b16 %v752, %v744
      %v793 = vpack.c.b16 %v753, %v745
      %v794 = vpack.c.b16 %v754, %v746
      %v795 = vpack.c.b16 %v755, %v747
      %v796 = vpack.c.b16 %v756, %v748
      %v797 = vpack.c.b16 %v757, %v749
      %v798 = vpack.c.b16 %v758, %v750
      %v799 = vpack.c.b16 %v767, %v759
      %v800 = vpack.c.b16 %v768, %v760
      %v801 = vpack.c.b16 %v769, %v761
      %v802 = vpack.c.b16 %v770, %v762
      %v803 = vpack.c.b16 %v771, %v763
      %v804 = vpack.c.b16 %v772, %v764
      %v805 = vpack.c.b16 %v773, %v765
      %v806 = vpack.c.b16 %v774, %v766
      %v840 = vsel %vm511, %v253, 0
      %842 = vmatprep.subr.bf16.mxu0 %v776
      %843 = vmatpush1.bf16.msra.mxu0 %v775
      %844 = vmatprep.subr.bf16.mxu0 %v784
      %845 = vmatpush1.bf16.msra.mxu0 %v783
      %846 = vmatprep.subr.bf16.mxu0 %v792
      %847 = vmatpush1.bf16.msra.mxu0 %v791
      %848 = vmatprep.subr.bf16.mxu0 %v800
      %849 = vmatpush1.bf16.msra.mxu0 %v799
      %850 = vmatprep.subr.bf16.mxu0 0
      %851 = vmatpush1.bf16.msra.mxu0 0
      %852 = vmatprep.subr.bf16.mxu0 0
      %853 = vmatpush1.bf16.msra.mxu0 0
      %854 = vmatprep.subr.bf16.mxu0 0
      %855 = vmatpush1.bf16.msra.mxu0 0
      %856 = vmatprep.subr.bf16.mxu0 0
      %857 = vmatpush1.bf16.msra.mxu0 0
      %858 = vmatprep.subr.bf16.mxu0 0
      %859 = vmatpush1.bf16.msra.mxu0 0
      %860 = vmatprep.subr.bf16.mxu0 0
      %861 = vmatpush1.bf16.msra.mxu0 0
      %862 = vmatprep.subr.bf16.mxu0 0
      %863 = vmatpush1.bf16.msra.mxu0 0
      %864 = vmatprep.subr.bf16.mxu0 0
      %865 = vmatpush1.bf16.msra.mxu0 0
      %866 = vmatprep.subr.bf16.mxu0 0
      %867 = vmatpush1.bf16.msra.mxu0 0
      %868 = vmatprep.subr.bf16.mxu0 0
      %869 = vmatpush1.bf16.msra.mxu0 0
      %870 = vmatprep.subr.bf16.mxu0 0
      %871 = vmatpush1.bf16.msra.mxu0 0
      %872 = vmatprep.subr.bf16.mxu0 0
      %873 = vmatpush1.bf16.msra.mxu0 0
      %874 = vmatprep.mubr.bf16.mxu0 0
      %875 = vmatmul.mubr.bf16.gmra.mrb[0].mxu0 %v840
      %v876 = vpop.f32.mrb[0].mxu0
      %v877 = vadd.f32 %v550, %v876
      %v878 = vpop.f32.mrb[0].mxu0
      %v879 = vadd.f32 %v552, %v878
      %v880 = vpop.f32.mrb[0].mxu0
      %v881 = vpop.f32.mrb[0].mxu0
      %882 = vdwg.mxu0
      %883 = vmatprep.subr.bf16.mxu0 %v778
      %884 = vmatpush1.bf16.msra.mxu0 %v777
      %885 = vmatprep.subr.bf16.mxu0 %v786
      %886 = vmatpush1.bf16.msra.mxu0 %v785
      %887 = vmatprep.subr.bf16.mxu0 %v794
      %888 = vmatpush1.bf16.msra.mxu0 %v793
      %889 = vmatprep.subr.bf16.mxu0 %v802
      %890 = vmatpush1.bf16.msra.mxu0 %v801
      %891 = vmatprep.subr.bf16.mxu0 0
      %892 = vmatpush1.bf16.msra.mxu0 0
      %893 = vmatprep.subr.bf16.mxu0 0
      %894 = vmatpush1.bf16.msra.mxu0 0
      %895 = vmatprep.subr.bf16.mxu0 0
      %896 = vmatpush1.bf16.msra.mxu0 0
      %897 = vmatprep.subr.bf16.mxu0 0
      %898 = vmatpush1.bf16.msra.mxu0 0
      %899 = vmatprep.subr.bf16.mxu0 0
      %900 = vmatpush1.bf16.msra.mxu0 0
      %901 = vmatprep.subr.bf16.mxu0 0
      %902 = vmatpush1.bf16.msra.mxu0 0
      %903 = vmatprep.subr.bf16.mxu0 0
      %904 = vmatpush1.bf16.msra.mxu0 0
      %905 = vmatprep.subr.bf16.mxu0 0
      %906 = vmatpush1.bf16.msra.mxu0 0
      %907 = vmatprep.subr.bf16.mxu0 0
      %908 = vmatpush1.bf16.msra.mxu0 0
      %909 = vmatprep.subr.bf16.mxu0 0
      %910 = vmatpush1.bf16.msra.mxu0 0
      %911 = vmatprep.subr.bf16.mxu0 0
      %912 = vmatpush1.bf16.msra.mxu0 0
      %913 = vmatprep.subr.bf16.mxu0 0
      %914 = vmatpush1.bf16.msra.mxu0 0
      %915 = vmatprep.mubr.bf16.mxu0 0
      %916 = vmatmul.mubr.bf16.gmra.mrb[0].mxu0 %v840
      %v917 = vpop.f32.mrb[0].mxu0
      %v918 = vadd.f32 %v591, %v917
      %v919 = vpop.f32.mrb[0].mxu0
      %v920 = vadd.f32 %v593, %v919
      %v921 = vpop.f32.mrb[0].mxu0
      %v922 = vpop.f32.mrb[0].mxu0
      %923 = vdwg.mxu0
      %924 = vmatprep.subr.bf16.mxu0 %v780
      %925 = vmatpush1.bf16.msra.mxu0 %v779
      %926 = vmatprep.subr.bf16.mxu0 %v788
      %927 = vmatpush1.bf16.msra.mxu0 %v787
      %928 = vmatprep.subr.bf16.mxu0 %v796
      %929 = vmatpush1.bf16.msra.mxu0 %v795
      %930 = vmatprep.subr.bf16.mxu0 %v804
      %931 = vmatpush1.bf16.msra.mxu0 %v803
      %932 = vmatprep.subr.bf16.mxu0 0
      %933 = vmatpush1.bf16.msra.mxu0 0
      %934 = vmatprep.subr.bf16.mxu0 0
      %935 = vmatpush1.bf16.msra.mxu0 0
      %936 = vmatprep.subr.bf16.mxu0 0
      %937 = vmatpush1.bf16.msra.mxu0 0
      %938 = vmatprep.subr.bf16.mxu0 0
      %939 = vmatpush1.bf16.msra.mxu0 0
      %940 = vmatprep.subr.bf16.mxu0 0
      %941 = vmatpush1.bf16.msra.mxu0 0
      %942 = vmatprep.subr.bf16.mxu0 0
      %943 = vmatpush1.bf16.msra.mxu0 0
      %944 = vmatprep.subr.bf16.mxu0 0
      %945 = vmatpush1.bf16.msra.mxu0 0
      %946 = vmatprep.subr.bf16.mxu0 0
      %947 = vmatpush1.bf16.msra.mxu0 0
      %948 = vmatprep.subr.bf16.mxu0 0
      %949 = vmatpush1.bf16.msra.mxu0 0
      %950 = vmatprep.subr.bf16.mxu0 0
      %951 = vmatpush1.bf16.msra.mxu0 0
      %952 = vmatprep.subr.bf16.mxu0 0
      %953 = vmatpush1.bf16.msra.mxu0 0
      %954 = vmatprep.subr.bf16.mxu0 0
      %955 = vmatpush1.bf16.msra.mxu0 0
      %956 = vmatprep.mubr.bf16.mxu0 0
      %957 = vmatmul.mubr.bf16.gmra.mrb[0].mxu0 %v840
      %v958 = vpop.f32.mrb[0].mxu0
      %v959 = vadd.f32 %v632, %v958
      %v960 = vpop.f32.mrb[0].mxu0
      %v961 = vadd.f32 %v634, %v960
      %v962 = vpop.f32.mrb[0].mxu0
      %v963 = vpop.f32.mrb[0].mxu0
      %964 = vdwg.mxu0
      %965 = vmatprep.subr.bf16.mxu0 %v782
      %966 = vmatpush1.bf16.msra.mxu0 %v781
      %967 = vmatprep.subr.bf16.mxu0 %v790
      %968 = vmatpush1.bf16.msra.mxu0 %v789
      %969 = vmatprep.subr.bf16.mxu0 %v798
      %970 = vmatpush1.bf16.msra.mxu0 %v797
      %971 = vmatprep.subr.bf16.mxu0 %v806
      %972 = vmatpush1.bf16.msra.mxu0 %v805
      %973 = vmatprep.subr.bf16.mxu0 0
      %974 = vmatpush1.bf16.msra.mxu0 0
      %975 = vmatprep.subr.bf16.mxu0 0
      %976 = vmatpush1.bf16.msra.mxu0 0
      %977 = vmatprep.subr.bf16.mxu0 0
      %978 = vmatpush1.bf16.msra.mxu0 0
      %979 = vmatprep.subr.bf16.mxu0 0
      %980 = vmatpush1.bf16.msra.mxu0 0
      %981 = vmatprep.subr.bf16.mxu0 0
      %982 = vmatpush1.bf16.msra.mxu0 0
      %983 = vmatprep.subr.bf16.mxu0 0
      %984 = vmatpush1.bf16.msra.mxu0 0
      %985 = vmatprep.subr.bf16.mxu0 0
      %986 = vmatpush1.bf16.msra.mxu0 0
      %987 = vmatprep.subr.bf16.mxu0 0
      %988 = vmatpush1.bf16.msra.mxu0 0
      %989 = vmatprep.subr.bf16.mxu0 0
      %990 = vmatpush1.bf16.msra.mxu0 0
      %991 = vmatprep.subr.bf16.mxu0 0
      %992 = vmatpush1.bf16.msra.mxu0 0
      %993 = vmatprep.subr.bf16.mxu0 0
      %994 = vmatpush1.bf16.msra.mxu0 0
      %995 = vmatprep.subr.bf16.mxu0 0
      %996 = vmatpush1.bf16.msra.mxu0 0
      %997 = vmatprep.mubr.bf16.mxu0 0
      %998 = vmatmul.mubr.bf16.gmra.mrb[0].mxu0 %v840
      %v999 = vpop.f32.mrb[0].mxu0
      %v1000 = vadd.f32 %v673, %v999
      %v1001 = vpop.f32.mrb[0].mxu0
      %v1002 = vadd.f32 %v675, %v1001
      %v1003 = vpop.f32.mrb[0].mxu0
      %v1004 = vpop.f32.mrb[0].mxu0
      %1005 = vdwg.mxu0
      %v1007 = vunpack.c.l.b16 %v253
      %v1008 = vpack.c.b16 %v1007, %v1007
      %v1010 = vshrl.u32 %v1008, 16
      %v1012 = vshll.u32 %v1008, 16
      %v1014 = vrot.slane %v1012, 1
      %v1015 = vor.u32 %v1010, %v1014
      %v1048 = vunpack.c.l.b16 %v319
      %v1049 = vunpack.c.h.b16 %v319
      %v1050 = vunpack.c.l.b16 %v320
      %v1051 = vunpack.c.h.b16 %v320
      %v1052 = vunpack.c.l.b16 %v321
      %v1053 = vunpack.c.h.b16 %v321
      %v1054 = vunpack.c.l.b16 %v322
      %v1055 = vunpack.c.h.b16 %v322
      %v1056 = vunpack.c.l.b16 %v323
      %v1057 = vunpack.c.h.b16 %v323
      %v1058 = vunpack.c.l.b16 %v324
      %v1059 = vunpack.c.h.b16 %v324
      %v1060 = vunpack.c.l.b16 %v325
      %v1061 = vunpack.c.h.b16 %v325
      %v1062 = vunpack.c.l.b16 %v326
      %v1063 = vunpack.c.h.b16 %v326
      %v1064 = vunpack.c.l.b16 %v327
      %v1065 = vunpack.c.h.b16 %v327
      %v1066 = vunpack.c.l.b16 %v328
      %v1067 = vunpack.c.h.b16 %v328
      %v1068 = vunpack.c.l.b16 %v329
      %v1069 = vunpack.c.h.b16 %v329
      %v1070 = vunpack.c.l.b16 %v330
      %v1071 = vunpack.c.h.b16 %v330
      %v1072 = vunpack.c.l.b16 %v331
      %v1073 = vunpack.c.h.b16 %v331
      %v1074 = vunpack.c.l.b16 %v332
      %v1075 = vunpack.c.h.b16 %v332
      %v1076 = vunpack.c.l.b16 %v333
      %v1077 = vunpack.c.h.b16 %v333
      %v1078 = vunpack.c.l.b16 %v334
      %v1079 = vunpack.c.h.b16 %v334
      %v1080 = vunpack.c.l.b16 %v335
      %v1081 = vunpack.c.h.b16 %v335
      %v1082 = vunpack.c.l.b16 %v336
      %v1083 = vunpack.c.h.b16 %v336
      %v1084 = vunpack.c.l.b16 %v337
      %v1085 = vunpack.c.h.b16 %v337
      %v1086 = vunpack.c.l.b16 %v338
      %v1087 = vunpack.c.h.b16 %v338
      %v1088 = vunpack.c.l.b16 %v339
      %v1089 = vunpack.c.h.b16 %v339
      %v1090 = vunpack.c.l.b16 %v340
      %v1091 = vunpack.c.h.b16 %v340
      %v1092 = vunpack.c.l.b16 %v341
      %v1093 = vunpack.c.h.b16 %v341
      %v1094 = vunpack.c.l.b16 %v342
      %v1095 = vunpack.c.h.b16 %v342
      %v1096 = vunpack.c.l.b16 %v343
      %v1097 = vunpack.c.h.b16 %v343
      %v1098 = vunpack.c.l.b16 %v344
      %v1099 = vunpack.c.h.b16 %v344
      %v1100 = vunpack.c.l.b16 %v345
      %v1101 = vunpack.c.h.b16 %v345
      %v1102 = vunpack.c.l.b16 %v346
      %v1103 = vunpack.c.h.b16 %v346
      %v1104 = vunpack.c.l.b16 %v347
      %v1105 = vunpack.c.h.b16 %v347
      %v1106 = vunpack.c.l.b16 %v348
      %v1107 = vunpack.c.h.b16 %v348
      %v1108 = vunpack.c.l.b16 %v349
      %v1109 = vunpack.c.h.b16 %v349
      %v1110 = vunpack.c.l.b16 %v350
      %v1111 = vunpack.c.h.b16 %v350
      %v1112 = vpack.c.b16 %v1056, %v1048
      %v1113 = vpack.c.b16 %v1057, %v1049
      %v1114 = vpack.c.b16 %v1058, %v1050
      %v1115 = vpack.c.b16 %v1059, %v1051
      %v1116 = vpack.c.b16 %v1060, %v1052
      %v1117 = vpack.c.b16 %v1061, %v1053
      %v1118 = vpack.c.b16 %v1062, %v1054
      %v1119 = vpack.c.b16 %v1063, %v1055
      %v1120 = vpack.c.b16 %v1072, %v1064
      %v1121 = vpack.c.b16 %v1073, %v1065
      %v1122 = vpack.c.b16 %v1074, %v1066
      %v1123 = vpack.c.b16 %v1075, %v1067
      %v1124 = vpack.c.b16 %v1076, %v1068
      %v1125 = vpack.c.b16 %v1077, %v1069
      %v1126 = vpack.c.b16 %v1078, %v1070
      %v1127 = vpack.c.b16 %v1079, %v1071
      %v1128 = vpack.c.b16 %v1088, %v1080
      %v1129 = vpack.c.b16 %v1089, %v1081
      %v1130 = vpack.c.b16 %v1090, %v1082
      %v1131 = vpack.c.b16 %v1091, %v1083
      %v1132 = vpack.c.b16 %v1092, %v1084
      %v1133 = vpack.c.b16 %v1093, %v1085
      %v1134 = vpack.c.b16 %v1094, %v1086
      %v1135 = vpack.c.b16 %v1095, %v1087
      %v1136 = vpack.c.b16 %v1104, %v1096
      %v1137 = vpack.c.b16 %v1105, %v1097
      %v1138 = vpack.c.b16 %v1106, %v1098
      %v1139 = vpack.c.b16 %v1107, %v1099
      %v1140 = vpack.c.b16 %v1108, %v1100
      %v1141 = vpack.c.b16 %v1109, %v1101
      %v1142 = vpack.c.b16 %v1110, %v1102
      %v1143 = vpack.c.b16 %v1111, %v1103
      %v1177 = vsel %vm511, %v1015, 0
      %1179 = vmatprep.subr.bf16.mxu0 %v1113
      %1180 = vmatpush1.bf16.msra.mxu0 %v1112
      %1181 = vmatprep.subr.bf16.mxu0 %v1121
      %1182 = vmatpush1.bf16.msra.mxu0 %v1120
      %1183 = vmatprep.subr.bf16.mxu0 %v1129
      %1184 = vmatpush1.bf16.msra.mxu0 %v1128
      %1185 = vmatprep.subr.bf16.mxu0 %v1137
      %1186 = vmatpush1.bf16.msra.mxu0 %v1136
      %1187 = vmatprep.subr.bf16.mxu0 0
      %1188 = vmatpush1.bf16.msra.mxu0 0
      %1189 = vmatprep.subr.bf16.mxu0 0
      %1190 = vmatpush1.bf16.msra.mxu0 0
      %1191 = vmatprep.subr.bf16.mxu0 0
      %1192 = vmatpush1.bf16.msra.mxu0 0
      %1193 = vmatprep.subr.bf16.mxu0 0
      %1194 = vmatpush1.bf16.msra.mxu0 0
      %1195 = vmatprep.subr.bf16.mxu0 0
      %1196 = vmatpush1.bf16.msra.mxu0 0
      %1197 = vmatprep.subr.bf16.mxu0 0
      %1198 = vmatpush1.bf16.msra.mxu0 0
      %1199 = vmatprep.subr.bf16.mxu0 0
      %1200 = vmatpush1.bf16.msra.mxu0 0
      %1201 = vmatprep.subr.bf16.mxu0 0
      %1202 = vmatpush1.bf16.msra.mxu0 0
      %1203 = vmatprep.subr.bf16.mxu0 0
      %1204 = vmatpush1.bf16.msra.mxu0 0
      %1205 = vmatprep.subr.bf16.mxu0 0
      %1206 = vmatpush1.bf16.msra.mxu0 0
      %1207 = vmatprep.subr.bf16.mxu0 0
      %1208 = vmatpush1.bf16.msra.mxu0 0
      %1209 = vmatprep.subr.bf16.mxu0 0
      %1210 = vmatpush1.bf16.msra.mxu0 0
      %1211 = vmatprep.mubr.bf16.mxu0 0
      %1212 = vmatmul.mubr.bf16.gmra.mrb[0].mxu0 %v1177
      %v1213 = vpop.f32.mrb[0].mxu0
      %v1214 = vadd.f32 0.0, %v1213
      %v1215 = vpop.f32.mrb[0].mxu0
      %v1216 = vadd.f32 0.0, %v1215
      %v1217 = vpop.f32.mrb[0].mxu0
      %v1218 = vpop.f32.mrb[0].mxu0
      %1219 = vdwg.mxu0
      %1220 = vmatprep.subr.bf16.mxu0 %v1115
      %1221 = vmatpush1.bf16.msra.mxu0 %v1114
      %1222 = vmatprep.subr.bf16.mxu0 %v1123
      %1223 = vmatpush1.bf16.msra.mxu0 %v1122
      %1224 = vmatprep.subr.bf16.mxu0 %v1131
      %1225 = vmatpush1.bf16.msra.mxu0 %v1130
      %1226 = vmatprep.subr.bf16.mxu0 %v1139
      %1227 = vmatpush1.bf16.msra.mxu0 %v1138
      %1228 = vmatprep.subr.bf16.mxu0 0
      %1229 = vmatpush1.bf16.msra.mxu0 0
      %1230 = vmatprep.subr.bf16.mxu0 0
      %1231 = vmatpush1.bf16.msra.mxu0 0
      %1232 = vmatprep.subr.bf16.mxu0 0
      %1233 = vmatpush1.bf16.msra.mxu0 0
      %1234 = vmatprep.subr.bf16.mxu0 0
      %1235 = vmatpush1.bf16.msra.mxu0 0
      %1236 = vmatprep.subr.bf16.mxu0 0
      %1237 = vmatpush1.bf16.msra.mxu0 0
      %1238 = vmatprep.subr.bf16.mxu0 0
      %1239 = vmatpush1.bf16.msra.mxu0 0
      %1240 = vmatprep.subr.bf16.mxu0 0
      %1241 = vmatpush1.bf16.msra.mxu0 0
      %1242 = vmatprep.subr.bf16.mxu0 0
      %1243 = vmatpush1.bf16.msra.mxu0 0
      %1244 = vmatprep.subr.bf16.mxu0 0
      %1245 = vmatpush1.bf16.msra.mxu0 0
      %1246 = vmatprep.subr.bf16.mxu0 0
      %1247 = vmatpush1.bf16.msra.mxu0 0
      %1248 = vmatprep.subr.bf16.mxu0 0
      %1249 = vmatpush1.bf16.msra.mxu0 0
      %1250 = vmatprep.subr.bf16.mxu0 0
      %1251 = vmatpush1.bf16.msra.mxu0 0
      %1252 = vmatprep.mubr.bf16.mxu0 0
      %1253 = vmatmul.mubr.bf16.gmra.mrb[0].mxu0 %v1177
      %v1254 = vpop.f32.mrb[0].mxu0
      %v1255 = vadd.f32 0.0, %v1254
      %v1256 = vpop.f32.mrb[0].mxu0
      %v1257 = vadd.f32 0.0, %v1256
      %v1258 = vpop.f32.mrb[0].mxu0
      %v1259 = vpop.f32.mrb[0].mxu0
      %1260 = vdwg.mxu0
      %1261 = vmatprep.subr.bf16.mxu0 %v1117
      %1262 = vmatpush1.bf16.msra.mxu0 %v1116
      %1263 = vmatprep.subr.bf16.mxu0 %v1125
      %1264 = vmatpush1.bf16.msra.mxu0 %v1124
      %1265 = vmatprep.subr.bf16.mxu0 %v1133
      %1266 = vmatpush1.bf16.msra.mxu0 %v1132
      %1267 = vmatprep.subr.bf16.mxu0 %v1141
      %1268 = vmatpush1.bf16.msra.mxu0 %v1140
      %1269 = vmatprep.subr.bf16.mxu0 0
      %1270 = vmatpush1.bf16.msra.mxu0 0
      %1271 = vmatprep.subr.bf16.mxu0 0
      %1272 = vmatpush1.bf16.msra.mxu0 0
      %1273 = vmatprep.subr.bf16.mxu0 0
      %1274 = vmatpush1.bf16.msra.mxu0 0
      %1275 = vmatprep.subr.bf16.mxu0 0
      %1276 = vmatpush1.bf16.msra.mxu0 0
      %1277 = vmatprep.subr.bf16.mxu0 0
      %1278 = vmatpush1.bf16.msra.mxu0 0
      %1279 = vmatprep.subr.bf16.mxu0 0
      %1280 = vmatpush1.bf16.msra.mxu0 0
      %1281 = vmatprep.subr.bf16.mxu0 0
      %1282 = vmatpush1.bf16.msra.mxu0 0
      %1283 = vmatprep.subr.bf16.mxu0 0
      %1284 = vmatpush1.bf16.msra.mxu0 0
      %1285 = vmatprep.subr.bf16.mxu0 0
      %1286 = vmatpush1.bf16.msra.mxu0 0
      %1287 = vmatprep.subr.bf16.mxu0 0
      %1288 = vmatpush1.bf16.msra.mxu0 0
      %1289 = vmatprep.subr.bf16.mxu0 0
      %1290 = vmatpush1.bf16.msra.mxu0 0
      %1291 = vmatprep.subr.bf16.mxu0 0
      %1292 = vmatpush1.bf16.msra.mxu0 0
      %1293 = vmatprep.mubr.bf16.mxu0 0
      %1294 = vmatmul.mubr.bf16.gmra.mrb[0].mxu0 %v1177
      %v1295 = vpop.f32.mrb[0].mxu0
      %v1296 = vadd.f32 0.0, %v1295
      %v1297 = vpop.f32.mrb[0].mxu0
      %v1298 = vadd.f32 0.0, %v1297
      %v1299 = vpop.f32.mrb[0].mxu0
      %v1300 = vpop.f32.mrb[0].mxu0
      %1301 = vdwg.mxu0
      %1302 = vmatprep.subr.bf16.mxu0 %v1119
      %1303 = vmatpush1.bf16.msra.mxu0 %v1118
      %1304 = vmatprep.subr.bf16.mxu0 %v1127
      %1305 = vmatpush1.bf16.msra.mxu0 %v1126
      %1306 = vmatprep.subr.bf16.mxu0 %v1135
      %1307 = vmatpush1.bf16.msra.mxu0 %v1134
      %1308 = vmatprep.subr.bf16.mxu0 %v1143
      %1309 = vmatpush1.bf16.msra.mxu0 %v1142
      %1310 = vmatprep.subr.bf16.mxu0 0
      %1311 = vmatpush1.bf16.msra.mxu0 0
      %1312 = vmatprep.subr.bf16.mxu0 0
      %1313 = vmatpush1.bf16.msra.mxu0 0
      %1314 = vmatprep.subr.bf16.mxu0 0
      %1315 = vmatpush1.bf16.msra.mxu0 0
      %1316 = vmatprep.subr.bf16.mxu0 0
      %1317 = vmatpush1.bf16.msra.mxu0 0
      %1318 = vmatprep.subr.bf16.mxu0 0
      %1319 = vmatpush1.bf16.msra.mxu0 0
      %1320 = vmatprep.subr.bf16.mxu0 0
      %1321 = vmatpush1.bf16.msra.mxu0 0
      %1322 = vmatprep.subr.bf16.mxu0 0
      %1323 = vmatpush1.bf16.msra.mxu0 0
      %1324 = vmatprep.subr.bf16.mxu0 0
      %1325 = vmatpush1.bf16.msra.mxu0 0
      %1326 = vmatprep.subr.bf16.mxu0 0
      %1327 = vmatpush1.bf16.msra.mxu0 0
      %1328 = vmatprep.subr.bf16.mxu0 0
      %1329 = vmatpush1.bf16.msra.mxu0 0
      %1330 = vmatprep.subr.bf16.mxu0 0
      %1331 = vmatpush1.bf16.msra.mxu0 0
      %1332 = vmatprep.subr.bf16.mxu0 0
      %1333 = vmatpush1.bf16.msra.mxu0 0
      %1334 = vmatprep.mubr.bf16.mxu0 0
      %1335 = vmatmul.mubr.bf16.gmra.mrb[0].mxu0 %v1177
      %v1336 = vpop.f32.mrb[0].mxu0
      %v1337 = vadd.f32 0.0, %v1336
      %v1338 = vpop.f32.mrb[0].mxu0
      %v1339 = vadd.f32 0.0, %v1338
      %v1340 = vpop.f32.mrb[0].mxu0
      %v1341 = vpop.f32.mrb[0].mxu0
      %1342 = vdwg.mxu0
      %v1343 = vadd.f32 %v877, %v1214
      %v1344 = vadd.f32 %v879, %v1216
      %v1345 = vadd.f32 %v918, %v1255
      %v1346 = vadd.f32 %v920, %v1257
      %v1347 = vadd.f32 %v959, %v1296
      %v1348 = vadd.f32 %v961, %v1298
      %v1349 = vadd.f32 %v1000, %v1337
      %v1350 = vadd.f32 %v1002, %v1339
      %1351 = vmatprep.subr.bf16.mxu0 %v448
      %1352 = vmatpush1.bf16.msra.mxu0 %v447
      %1353 = vmatprep.subr.bf16.mxu0 %v456
      %1354 = vmatpush1.bf16.msra.mxu0 %v455
      %1355 = vmatprep.subr.bf16.mxu0 %v464
      %1356 = vmatpush1.bf16.msra.mxu0 %v463
      %1357 = vmatprep.subr.bf16.mxu0 %v472
      %1358 = vmatpush1.bf16.msra.mxu0 %v471
      %1359 = vmatprep.subr.bf16.mxu0 0
      %1360 = vmatpush1.bf16.msra.mxu0 0
      %1361 = vmatprep.subr.bf16.mxu0 0
      %1362 = vmatpush1.bf16.msra.mxu0 0
      %1363 = vmatprep.subr.bf16.mxu0 0
      %1364 = vmatpush1.bf16.msra.mxu0 0
      %1365 = vmatprep.subr.bf16.mxu0 0
      %1366 = vmatpush1.bf16.msra.mxu0 0
      %1367 = vmatprep.subr.bf16.mxu0 0
      %1368 = vmatpush1.bf16.msra.mxu0 0
      %1369 = vmatprep.subr.bf16.mxu0 0
      %1370 = vmatpush1.bf16.msra.mxu0 0
      %1371 = vmatprep.subr.bf16.mxu0 0
      %1372 = vmatpush1.bf16.msra.mxu0 0
      %1373 = vmatprep.subr.bf16.mxu0 0
      %1374 = vmatpush1.bf16.msra.mxu0 0
      %1375 = vmatprep.subr.bf16.mxu0 0
      %1376 = vmatpush1.bf16.msra.mxu0 0
      %1377 = vmatprep.subr.bf16.mxu0 0
      %1378 = vmatpush1.bf16.msra.mxu0 0
      %1379 = vmatprep.subr.bf16.mxu0 0
      %1380 = vmatpush1.bf16.msra.mxu0 0
      %1381 = vmatprep.subr.bf16.mxu0 0
      %1382 = vmatpush1.bf16.msra.mxu0 0
      %1383 = vmatprep.mubr.bf16.mxu0 0
      %1384 = vmatmul.mubr.bf16.gmra.mrb[0].mxu0 %v1177
      %v1385 = vpop.f32.mrb[0].mxu0
      %v1386 = vadd.f32 0.0, %v1385
      %v1387 = vpop.f32.mrb[0].mxu0
      %v1388 = vadd.f32 0.0, %v1387
      %v1389 = vpop.f32.mrb[0].mxu0
      %v1390 = vpop.f32.mrb[0].mxu0
      %1391 = vdwg.mxu0
      %1392 = vmatprep.subr.bf16.mxu0 %v450
      %1393 = vmatpush1.bf16.msra.mxu0 %v449
      %1394 = vmatprep.subr.bf16.mxu0 %v458
      %1395 = vmatpush1.bf16.msra.mxu0 %v457
      %1396 = vmatprep.subr.bf16.mxu0 %v466
      %1397 = vmatpush1.bf16.msra.mxu0 %v465
      %1398 = vmatprep.subr.bf16.mxu0 %v474
      %1399 = vmatpush1.bf16.msra.mxu0 %v473
      %1400 = vmatprep.subr.bf16.mxu0 0
      %1401 = vmatpush1.bf16.msra.mxu0 0
      %1402 = vmatprep.subr.bf16.mxu0 0
      %1403 = vmatpush1.bf16.msra.mxu0 0
      %1404 = vmatprep.subr.bf16.mxu0 0
      %1405 = vmatpush1.bf16.msra.mxu0 0
      %1406 = vmatprep.subr.bf16.mxu0 0
      %1407 = vmatpush1.bf16.msra.mxu0 0
      %1408 = vmatprep.subr.bf16.mxu0 0
      %1409 = vmatpush1.bf16.msra.mxu0 0
      %1410 = vmatprep.subr.bf16.mxu0 0
      %1411 = vmatpush1.bf16.msra.mxu0 0
      %1412 = vmatprep.subr.bf16.mxu0 0
      %1413 = vmatpush1.bf16.msra.mxu0 0
      %1414 = vmatprep.subr.bf16.mxu0 0
      %1415 = vmatpush1.bf16.msra.mxu0 0
      %1416 = vmatprep.subr.bf16.mxu0 0
      %1417 = vmatpush1.bf16.msra.mxu0 0
      %1418 = vmatprep.subr.bf16.mxu0 0
      %1419 = vmatpush1.bf16.msra.mxu0 0
      %1420 = vmatprep.subr.bf16.mxu0 0
      %1421 = vmatpush1.bf16.msra.mxu0 0
      %1422 = vmatprep.subr.bf16.mxu0 0
      %1423 = vmatpush1.bf16.msra.mxu0 0
      %1424 = vmatprep.mubr.bf16.mxu0 0
      %1425 = vmatmul.mubr.bf16.gmra.mrb[0].mxu0 %v1177
      %v1426 = vpop.f32.mrb[0].mxu0
      %v1427 = vadd.f32 0.0, %v1426
      %v1428 = vpop.f32.mrb[0].mxu0
      %v1429 = vadd.f32 0.0, %v1428
      %v1430 = vpop.f32.mrb[0].mxu0
      %v1431 = vpop.f32.mrb[0].mxu0
      %1432 = vdwg.mxu0
      %1433 = vmatprep.subr.bf16.mxu0 %v452
      %1434 = vmatpush1.bf16.msra.mxu0 %v451
      %1435 = vmatprep.subr.bf16.mxu0 %v460
      %1436 = vmatpush1.bf16.msra.mxu0 %v459
      %1437 = vmatprep.subr.bf16.mxu0 %v468
      %1438 = vmatpush1.bf16.msra.mxu0 %v467
      %1439 = vmatprep.subr.bf16.mxu0 %v476
      %1440 = vmatpush1.bf16.msra.mxu0 %v475
      %1441 = vmatprep.subr.bf16.mxu0 0
      %1442 = vmatpush1.bf16.msra.mxu0 0
      %1443 = vmatprep.subr.bf16.mxu0 0
      %1444 = vmatpush1.bf16.msra.mxu0 0
      %1445 = vmatprep.subr.bf16.mxu0 0
      %1446 = vmatpush1.bf16.msra.mxu0 0
      %1447 = vmatprep.subr.bf16.mxu0 0
      %1448 = vmatpush1.bf16.msra.mxu0 0
      %1449 = vmatprep.subr.bf16.mxu0 0
      %1450 = vmatpush1.bf16.msra.mxu0 0
      %1451 = vmatprep.subr.bf16.mxu0 0
      %1452 = vmatpush1.bf16.msra.mxu0 0
      %1453 = vmatprep.subr.bf16.mxu0 0
      %1454 = vmatpush1.bf16.msra.mxu0 0
      %1455 = vmatprep.subr.bf16.mxu0 0
      %1456 = vmatpush1.bf16.msra.mxu0 0
      %1457 = vmatprep.subr.bf16.mxu0 0
      %1458 = vmatpush1.bf16.msra.mxu0 0
      %1459 = vmatprep.subr.bf16.mxu0 0
      %1460 = vmatpush1.bf16.msra.mxu0 0
      %1461 = vmatprep.subr.bf16.mxu0 0
      %1462 = vmatpush1.bf16.msra.mxu0 0
      %1463 = vmatprep.subr.bf16.mxu0 0
      %1464 = vmatpush1.bf16.msra.mxu0 0
      %1465 = vmatprep.mubr.bf16.mxu0 0
      %1466 = vmatmul.mubr.bf16.gmra.mrb[0].mxu0 %v1177
      %v1467 = vpop.f32.mrb[0].mxu0
      %v1468 = vadd.f32 0.0, %v1467
      %v1469 = vpop.f32.mrb[0].mxu0
      %v1470 = vadd.f32 0.0, %v1469
      %v1471 = vpop.f32.mrb[0].mxu0
      %v1472 = vpop.f32.mrb[0].mxu0
      %1473 = vdwg.mxu0
      %1474 = vmatprep.subr.bf16.mxu0 %v454
      %1475 = vmatpush1.bf16.msra.mxu0 %v453
      %1476 = vmatprep.subr.bf16.mxu0 %v462
      %1477 = vmatpush1.bf16.msra.mxu0 %v461
      %1478 = vmatprep.subr.bf16.mxu0 %v470
      %1479 = vmatpush1.bf16.msra.mxu0 %v469
      %1480 = vmatprep.subr.bf16.mxu0 %v478
      %1481 = vmatpush1.bf16.msra.mxu0 %v477
      %1482 = vmatprep.subr.bf16.mxu0 0
      %1483 = vmatpush1.bf16.msra.mxu0 0
      %1484 = vmatprep.subr.bf16.mxu0 0
      %1485 = vmatpush1.bf16.msra.mxu0 0
      %1486 = vmatprep.subr.bf16.mxu0 0
      %1487 = vmatpush1.bf16.msra.mxu0 0
      %1488 = vmatprep.subr.bf16.mxu0 0
      %1489 = vmatpush1.bf16.msra.mxu0 0
      %1490 = vmatprep.subr.bf16.mxu0 0
      %1491 = vmatpush1.bf16.msra.mxu0 0
      %1492 = vmatprep.subr.bf16.mxu0 0
      %1493 = vmatpush1.bf16.msra.mxu0 0
      %1494 = vmatprep.subr.bf16.mxu0 0
      %1495 = vmatpush1.bf16.msra.mxu0 0
      %1496 = vmatprep.subr.bf16.mxu0 0
      %1497 = vmatpush1.bf16.msra.mxu0 0
      %1498 = vmatprep.subr.bf16.mxu0 0
      %1499 = vmatpush1.bf16.msra.mxu0 0
      %1500 = vmatprep.subr.bf16.mxu0 0
      %1501 = vmatpush1.bf16.msra.mxu0 0
      %1502 = vmatprep.subr.bf16.mxu0 0
      %1503 = vmatpush1.bf16.msra.mxu0 0
      %1504 = vmatprep.subr.bf16.mxu0 0
      %1505 = vmatpush1.bf16.msra.mxu0 0
      %1506 = vmatprep.mubr.bf16.mxu0 0
      %1507 = vmatmul.mubr.bf16.gmra.mrb[0].mxu0 %v1177
      %v1508 = vpop.f32.mrb[0].mxu0
      %v1509 = vadd.f32 0.0, %v1508
      %v1510 = vpop.f32.mrb[0].mxu0
      %v1511 = vadd.f32 0.0, %v1510
      %v1512 = vpop.f32.mrb[0].mxu0
      %v1513 = vpop.f32.mrb[0].mxu0
      %1514 = vdwg.mxu0
      %1515 = vmatprep.subr.bf16.mxu0 %v776
      %1516 = vmatpush1.bf16.msra.mxu0 %v775
      %1517 = vmatprep.subr.bf16.mxu0 %v784
      %1518 = vmatpush1.bf16.msra.mxu0 %v783
      %1519 = vmatprep.subr.bf16.mxu0 %v792
      %1520 = vmatpush1.bf16.msra.mxu0 %v791
      %1521 = vmatprep.subr.bf16.mxu0 %v800
      %1522 = vmatpush1.bf16.msra.mxu0 %v799
      %1523 = vmatprep.subr.bf16.mxu0 0
      %1524 = vmatpush1.bf16.msra.mxu0 0
      %1525 = vmatprep.subr.bf16.mxu0 0
      %1526 = vmatpush1.bf16.msra.mxu0 0
      %1527 = vmatprep.subr.bf16.mxu0 0
      %1528 = vmatpush1.bf16.msra.mxu0 0
      %1529 = vmatprep.subr.bf16.mxu0 0
      %1530 = vmatpush1.bf16.msra.mxu0 0
      %1531 = vmatprep.subr.bf16.mxu0 0
      %1532 = vmatpush1.bf16.msra.mxu0 0
      %1533 = vmatprep.subr.bf16.mxu0 0
      %1534 = vmatpush1.bf16.msra.mxu0 0
      %1535 = vmatprep.subr.bf16.mxu0 0
      %1536 = vmatpush1.bf16.msra.mxu0 0
      %1537 = vmatprep.subr.bf16.mxu0 0
      %1538 = vmatpush1.bf16.msra.mxu0 0
      %1539 = vmatprep.subr.bf16.mxu0 0
      %1540 = vmatpush1.bf16.msra.mxu0 0
      %1541 = vmatprep.subr.bf16.mxu0 0
      %1542 = vmatpush1.bf16.msra.mxu0 0
      %1543 = vmatprep.subr.bf16.mxu0 0
      %1544 = vmatpush1.bf16.msra.mxu0 0
      %1545 = vmatprep.subr.bf16.mxu0 0
      %1546 = vmatpush1.bf16.msra.mxu0 0
      %1547 = vmatprep.mubr.bf16.mxu0 0
      %1548 = vmatmul.mubr.bf16.gmra.mrb[0].mxu0 %v513
      %v1549 = vpop.f32.mrb[0].mxu0
      %v1550 = vadd.f32 %v1386, %v1549
      %v1551 = vpop.f32.mrb[0].mxu0
      %v1552 = vadd.f32 %v1388, %v1551
      %v1553 = vpop.f32.mrb[0].mxu0
      %v1554 = vpop.f32.mrb[0].mxu0
      %1555 = vdwg.mxu0
      %1556 = vmatprep.subr.bf16.mxu0 %v778
      %1557 = vmatpush1.bf16.msra.mxu0 %v777
      %1558 = vmatprep.subr.bf16.mxu0 %v786
      %1559 = vmatpush1.bf16.msra.mxu0 %v785
      %1560 = vmatprep.subr.bf16.mxu0 %v794
      %1561 = vmatpush1.bf16.msra.mxu0 %v793
      %1562 = vmatprep.subr.bf16.mxu0 %v802
      %1563 = vmatpush1.bf16.msra.mxu0 %v801
      %1564 = vmatprep.subr.bf16.mxu0 0
      %1565 = vmatpush1.bf16.msra.mxu0 0
      %1566 = vmatprep.subr.bf16.mxu0 0
      %1567 = vmatpush1.bf16.msra.mxu0 0
      %1568 = vmatprep.subr.bf16.mxu0 0
      %1569 = vmatpush1.bf16.msra.mxu0 0
      %1570 = vmatprep.subr.bf16.mxu0 0
      %1571 = vmatpush1.bf16.msra.mxu0 0
      %1572 = vmatprep.subr.bf16.mxu0 0
      %1573 = vmatpush1.bf16.msra.mxu0 0
      %1574 = vmatprep.subr.bf16.mxu0 0
      %1575 = vmatpush1.bf16.msra.mxu0 0
      %1576 = vmatprep.subr.bf16.mxu0 0
      %1577 = vmatpush1.bf16.msra.mxu0 0
      %1578 = vmatprep.subr.bf16.mxu0 0
      %1579 = vmatpush1.bf16.msra.mxu0 0
      %1580 = vmatprep.subr.bf16.mxu0 0
      %1581 = vmatpush1.bf16.msra.mxu0 0
      %1582 = vmatprep.subr.bf16.mxu0 0
      %1583 = vmatpush1.bf16.msra.mxu0 0
      %1584 = vmatprep.subr.bf16.mxu0 0
      %1585 = vmatpush1.bf16.msra.mxu0 0
      %1586 = vmatprep.subr.bf16.mxu0 0
      %1587 = vmatpush1.bf16.msra.mxu0 0
      %1588 = vmatprep.mubr.bf16.mxu0 0
      %1589 = vmatmul.mubr.bf16.gmra.mrb[0].mxu0 %v513
      %v1590 = vpop.f32.mrb[0].mxu0
      %v1591 = vadd.f32 %v1427, %v1590
      %v1592 = vpop.f32.mrb[0].mxu0
      %v1593 = vadd.f32 %v1429, %v1592
      %v1594 = vpop.f32.mrb[0].mxu0
      %v1595 = vpop.f32.mrb[0].mxu0
      %1596 = vdwg.mxu0
      %1597 = vmatprep.subr.bf16.mxu0 %v780
      %1598 = vmatpush1.bf16.msra.mxu0 %v779
      %1599 = vmatprep.subr.bf16.mxu0 %v788
      %1600 = vmatpush1.bf16.msra.mxu0 %v787
      %1601 = vmatprep.subr.bf16.mxu0 %v796
      %1602 = vmatpush1.bf16.msra.mxu0 %v795
      %1603 = vmatprep.subr.bf16.mxu0 %v804
      %1604 = vmatpush1.bf16.msra.mxu0 %v803
      %1605 = vmatprep.subr.bf16.mxu0 0
      %1606 = vmatpush1.bf16.msra.mxu0 0
      %1607 = vmatprep.subr.bf16.mxu0 0
      %1608 = vmatpush1.bf16.msra.mxu0 0
      %1609 = vmatprep.subr.bf16.mxu0 0
      %1610 = vmatpush1.bf16.msra.mxu0 0
      %1611 = vmatprep.subr.bf16.mxu0 0
      %1612 = vmatpush1.bf16.msra.mxu0 0
      %1613 = vmatprep.subr.bf16.mxu0 0
      %1614 = vmatpush1.bf16.msra.mxu0 0
      %1615 = vmatprep.subr.bf16.mxu0 0
      %1616 = vmatpush1.bf16.msra.mxu0 0
      %1617 = vmatprep.subr.bf16.mxu0 0
      %1618 = vmatpush1.bf16.msra.mxu0 0
      %1619 = vmatprep.subr.bf16.mxu0 0
      %1620 = vmatpush1.bf16.msra.mxu0 0
      %1621 = vmatprep.subr.bf16.mxu0 0
      %1622 = vmatpush1.bf16.msra.mxu0 0
      %1623 = vmatprep.subr.bf16.mxu0 0
      %1624 = vmatpush1.bf16.msra.mxu0 0
      %1625 = vmatprep.subr.bf16.mxu0 0
      %1626 = vmatpush1.bf16.msra.mxu0 0
      %1627 = vmatprep.subr.bf16.mxu0 0
      %1628 = vmatpush1.bf16.msra.mxu0 0
      %1629 = vmatprep.mubr.bf16.mxu0 0
      %1630 = vmatmul.mubr.bf16.gmra.mrb[0].mxu0 %v513
      %v1631 = vpop.f32.mrb[0].mxu0
      %v1632 = vadd.f32 %v1468, %v1631
      %v1633 = vpop.f32.mrb[0].mxu0
      %v1634 = vadd.f32 %v1470, %v1633
      %v1635 = vpop.f32.mrb[0].mxu0
      %v1636 = vpop.f32.mrb[0].mxu0
      %1637 = vdwg.mxu0
      %1638 = vmatprep.subr.bf16.mxu0 %v782
      %1639 = vmatpush1.bf16.msra.mxu0 %v781
      %1640 = vmatprep.subr.bf16.mxu0 %v790
      %1641 = vmatpush1.bf16.msra.mxu0 %v789
      %1642 = vmatprep.subr.bf16.mxu0 %v798
      %1643 = vmatpush1.bf16.msra.mxu0 %v797
      %1644 = vmatprep.subr.bf16.mxu0 %v806
      %1645 = vmatpush1.bf16.msra.mxu0 %v805
      %1646 = vmatprep.subr.bf16.mxu0 0
      %1647 = vmatpush1.bf16.msra.mxu0 0
      %1648 = vmatprep.subr.bf16.mxu0 0
      %1649 = vmatpush1.bf16.msra.mxu0 0
      %1650 = vmatprep.subr.bf16.mxu0 0
      %1651 = vmatpush1.bf16.msra.mxu0 0
      %1652 = vmatprep.subr.bf16.mxu0 0
      %1653 = vmatpush1.bf16.msra.mxu0 0
      %1654 = vmatprep.subr.bf16.mxu0 0
      %1655 = vmatpush1.bf16.msra.mxu0 0
      %1656 = vmatprep.subr.bf16.mxu0 0
      %1657 = vmatpush1.bf16.msra.mxu0 0
      %1658 = vmatprep.subr.bf16.mxu0 0
      %1659 = vmatpush1.bf16.msra.mxu0 0
      %1660 = vmatprep.subr.bf16.mxu0 0
      %1661 = vmatpush1.bf16.msra.mxu0 0
      %1662 = vmatprep.subr.bf16.mxu0 0
      %1663 = vmatpush1.bf16.msra.mxu0 0
      %1664 = vmatprep.subr.bf16.mxu0 0
      %1665 = vmatpush1.bf16.msra.mxu0 0
      %1666 = vmatprep.subr.bf16.mxu0 0
      %1667 = vmatpush1.bf16.msra.mxu0 0
      %1668 = vmatprep.subr.bf16.mxu0 0
      %1669 = vmatpush1.bf16.msra.mxu0 0
      %1670 = vmatprep.mubr.bf16.mxu0 0
      %1671 = vmatmul.mubr.bf16.gmra.mrb[0].mxu0 %v513
      %v1672 = vpop.f32.mrb[0].mxu0
      %v1673 = vadd.f32 %v1509, %v1672
      %v1674 = vpop.f32.mrb[0].mxu0
      %v1675 = vadd.f32 %v1511, %v1674
      %v1676 = vpop.f32.mrb[0].mxu0
      %v1677 = vpop.f32.mrb[0].mxu0
      %1678 = vdwg.mxu0
      %v1680 = vunpack.c.l.b16 %v254
      %v1681 = vpack.c.b16 %v1680, %v1680
      %v1683 = vshrl.u32 %v1681, 16
      %v1685 = vshll.u32 %v1681, 16
      %v1687 = vrot.slane %v1685, 1
      %v1688 = vor.u32 %v1683, %v1687
      %v1690 = vsel %vm511, %v1688, 0
      %1692 = vmatprep.subr.bf16.mxu0 %v1113
      %1693 = vmatpush1.bf16.msra.mxu0 %v1112
      %1694 = vmatprep.subr.bf16.mxu0 %v1121
      %1695 = vmatpush1.bf16.msra.mxu0 %v1120
      %1696 = vmatprep.subr.bf16.mxu0 %v1129
      %1697 = vmatpush1.bf16.msra.mxu0 %v1128
      %1698 = vmatprep.subr.bf16.mxu0 %v1137
      %1699 = vmatpush1.bf16.msra.mxu0 %v1136
      %1700 = vmatprep.subr.bf16.mxu0 0
      %1701 = vmatpush1.bf16.msra.mxu0 0
      %1702 = vmatprep.subr.bf16.mxu0 0
      %1703 = vmatpush1.bf16.msra.mxu0 0
      %1704 = vmatprep.subr.bf16.mxu0 0
      %1705 = vmatpush1.bf16.msra.mxu0 0
      %1706 = vmatprep.subr.bf16.mxu0 0
      %1707 = vmatpush1.bf16.msra.mxu0 0
      %1708 = vmatprep.subr.bf16.mxu0 0
      %1709 = vmatpush1.bf16.msra.mxu0 0
      %1710 = vmatprep.subr.bf16.mxu0 0
      %1711 = vmatpush1.bf16.msra.mxu0 0
      %1712 = vmatprep.subr.bf16.mxu0 0
      %1713 = vmatpush1.bf16.msra.mxu0 0
      %1714 = vmatprep.subr.bf16.mxu0 0
      %1715 = vmatpush1.bf16.msra.mxu0 0
      %1716 = vmatprep.subr.bf16.mxu0 0
      %1717 = vmatpush1.bf16.msra.mxu0 0
      %1718 = vmatprep.subr.bf16.mxu0 0
      %1719 = vmatpush1.bf16.msra.mxu0 0
      %1720 = vmatprep.subr.bf16.mxu0 0
      %1721 = vmatpush1.bf16.msra.mxu0 0
      %1722 = vmatprep.subr.bf16.mxu0 0
      %1723 = vmatpush1.bf16.msra.mxu0 0
      %1724 = vmatprep.mubr.bf16.mxu0 0
      %1725 = vmatmul.mubr.bf16.gmra.mrb[0].mxu0 %v1690
      %v1726 = vpop.f32.mrb[0].mxu0
      %v1727 = vadd.f32 0.0, %v1726
      %v1728 = vpop.f32.mrb[0].mxu0
      %v1729 = vadd.f32 0.0, %v1728
      %v1730 = vpop.f32.mrb[0].mxu0
      %v1731 = vpop.f32.mrb[0].mxu0
      %1732 = vdwg.mxu0
      %1733 = vmatprep.subr.bf16.mxu0 %v1115
      %1734 = vmatpush1.bf16.msra.mxu0 %v1114
      %1735 = vmatprep.subr.bf16.mxu0 %v1123
      %1736 = vmatpush1.bf16.msra.mxu0 %v1122
      %1737 = vmatprep.subr.bf16.mxu0 %v1131
      %1738 = vmatpush1.bf16.msra.mxu0 %v1130
      %1739 = vmatprep.subr.bf16.mxu0 %v1139
      %1740 = vmatpush1.bf16.msra.mxu0 %v1138
      %1741 = vmatprep.subr.bf16.mxu0 0
      %1742 = vmatpush1.bf16.msra.mxu0 0
      %1743 = vmatprep.subr.bf16.mxu0 0
      %1744 = vmatpush1.bf16.msra.mxu0 0
      %1745 = vmatprep.subr.bf16.mxu0 0
      %1746 = vmatpush1.bf16.msra.mxu0 0
      %1747 = vmatprep.subr.bf16.mxu0 0
      %1748 = vmatpush1.bf16.msra.mxu0 0
      %1749 = vmatprep.subr.bf16.mxu0 0
      %1750 = vmatpush1.bf16.msra.mxu0 0
      %1751 = vmatprep.subr.bf16.mxu0 0
      %1752 = vmatpush1.bf16.msra.mxu0 0
      %1753 = vmatprep.subr.bf16.mxu0 0
      %1754 = vmatpush1.bf16.msra.mxu0 0
      %1755 = vmatprep.subr.bf16.mxu0 0
      %1756 = vmatpush1.bf16.msra.mxu0 0
      %1757 = vmatprep.subr.bf16.mxu0 0
      %1758 = vmatpush1.bf16.msra.mxu0 0
      %1759 = vmatprep.subr.bf16.mxu0 0
      %1760 = vmatpush1.bf16.msra.mxu0 0
      %1761 = vmatprep.subr.bf16.mxu0 0
      %1762 = vmatpush1.bf16.msra.mxu0 0
      %1763 = vmatprep.subr.bf16.mxu0 0
      %1764 = vmatpush1.bf16.msra.mxu0 0
      %1765 = vmatprep.mubr.bf16.mxu0 0
      %1766 = vmatmul.mubr.bf16.gmra.mrb[0].mxu0 %v1690
      %v1767 = vpop.f32.mrb[0].mxu0
      %v1768 = vadd.f32 0.0, %v1767
      %v1769 = vpop.f32.mrb[0].mxu0
      %v1770 = vadd.f32 0.0, %v1769
      %v1771 = vpop.f32.mrb[0].mxu0
      %v1772 = vpop.f32.mrb[0].mxu0
      %1773 = vdwg.mxu0
      %1774 = vmatprep.subr.bf16.mxu0 %v1117
      %1775 = vmatpush1.bf16.msra.mxu0 %v1116
      %1776 = vmatprep.subr.bf16.mxu0 %v1125
      %1777 = vmatpush1.bf16.msra.mxu0 %v1124
      %1778 = vmatprep.subr.bf16.mxu0 %v1133
      %1779 = vmatpush1.bf16.msra.mxu0 %v1132
      %1780 = vmatprep.subr.bf16.mxu0 %v1141
      %1781 = vmatpush1.bf16.msra.mxu0 %v1140
      %1782 = vmatprep.subr.bf16.mxu0 0
      %1783 = vmatpush1.bf16.msra.mxu0 0
      %1784 = vmatprep.subr.bf16.mxu0 0
      %1785 = vmatpush1.bf16.msra.mxu0 0
      %1786 = vmatprep.subr.bf16.mxu0 0
      %1787 = vmatpush1.bf16.msra.mxu0 0
      %1788 = vmatprep.subr.bf16.mxu0 0
      %1789 = vmatpush1.bf16.msra.mxu0 0
      %1790 = vmatprep.subr.bf16.mxu0 0
      %1791 = vmatpush1.bf16.msra.mxu0 0
      %1792 = vmatprep.subr.bf16.mxu0 0
      %1793 = vmatpush1.bf16.msra.mxu0 0
      %1794 = vmatprep.subr.bf16.mxu0 0
      %1795 = vmatpush1.bf16.msra.mxu0 0
      %1796 = vmatprep.subr.bf16.mxu0 0
      %1797 = vmatpush1.bf16.msra.mxu0 0
      %1798 = vmatprep.subr.bf16.mxu0 0
      %1799 = vmatpush1.bf16.msra.mxu0 0
      %1800 = vmatprep.subr.bf16.mxu0 0
      %1801 = vmatpush1.bf16.msra.mxu0 0
      %1802 = vmatprep.subr.bf16.mxu0 0
      %1803 = vmatpush1.bf16.msra.mxu0 0
      %1804 = vmatprep.subr.bf16.mxu0 0
      %1805 = vmatpush1.bf16.msra.mxu0 0
      %1806 = vmatprep.mubr.bf16.mxu0 0
      %1807 = vmatmul.mubr.bf16.gmra.mrb[0].mxu0 %v1690
      %v1808 = vpop.f32.mrb[0].mxu0
      %v1809 = vadd.f32 0.0, %v1808
      %v1810 = vpop.f32.mrb[0].mxu0
      %v1811 = vadd.f32 0.0, %v1810
      %v1812 = vpop.f32.mrb[0].mxu0
      %v1813 = vpop.f32.mrb[0].mxu0
      %1814 = vdwg.mxu0
      %1815 = vmatprep.subr.bf16.mxu0 %v1119
      %1816 = vmatpush1.bf16.msra.mxu0 %v1118
      %1817 = vmatprep.subr.bf16.mxu0 %v1127
      %1818 = vmatpush1.bf16.msra.mxu0 %v1126
      %1819 = vmatprep.subr.bf16.mxu0 %v1135
      %1820 = vmatpush1.bf16.msra.mxu0 %v1134
      %1821 = vmatprep.subr.bf16.mxu0 %v1143
      %1822 = vmatpush1.bf16.msra.mxu0 %v1142
      %1823 = vmatprep.subr.bf16.mxu0 0
      %1824 = vmatpush1.bf16.msra.mxu0 0
      %1825 = vmatprep.subr.bf16.mxu0 0
      %1826 = vmatpush1.bf16.msra.mxu0 0
      %1827 = vmatprep.subr.bf16.mxu0 0
      %1828 = vmatpush1.bf16.msra.mxu0 0
      %1829 = vmatprep.subr.bf16.mxu0 0
      %1830 = vmatpush1.bf16.msra.mxu0 0
      %1831 = vmatprep.subr.bf16.mxu0 0
      %1832 = vmatpush1.bf16.msra.mxu0 0
      %1833 = vmatprep.subr.bf16.mxu0 0
      %1834 = vmatpush1.bf16.msra.mxu0 0
      %1835 = vmatprep.subr.bf16.mxu0 0
      %1836 = vmatpush1.bf16.msra.mxu0 0
      %1837 = vmatprep.subr.bf16.mxu0 0
      %1838 = vmatpush1.bf16.msra.mxu0 0
      %1839 = vmatprep.subr.bf16.mxu0 0
      %1840 = vmatpush1.bf16.msra.mxu0 0
      %1841 = vmatprep.subr.bf16.mxu0 0
      %1842 = vmatpush1.bf16.msra.mxu0 0
      %1843 = vmatprep.subr.bf16.mxu0 0
      %1844 = vmatpush1.bf16.msra.mxu0 0
      %1845 = vmatprep.subr.bf16.mxu0 0
      %1846 = vmatpush1.bf16.msra.mxu0 0
      %1847 = vmatprep.mubr.bf16.mxu0 0
      %1848 = vmatmul.mubr.bf16.gmra.mrb[0].mxu0 %v1690
      %v1849 = vpop.f32.mrb[0].mxu0
      %v1850 = vadd.f32 0.0, %v1849
      %v1851 = vpop.f32.mrb[0].mxu0
      %v1852 = vadd.f32 0.0, %v1851
      %v1853 = vpop.f32.mrb[0].mxu0
      %v1854 = vpop.f32.mrb[0].mxu0
      %1855 = vdwg.mxu0
      %v1856 = vadd.f32 %v1550, %v1727
      %v1857 = vadd.f32 %v1552, %v1729
      %v1858 = vadd.f32 %v1591, %v1768
      %v1859 = vadd.f32 %v1593, %v1770
      %v1860 = vadd.f32 %v1632, %v1809
      %v1861 = vadd.f32 %v1634, %v1811
      %v1862 = vadd.f32 %v1673, %v1850
      %v1863 = vadd.f32 %v1675, %v1852
      %v1864 = vmax.f32 %v1343, %v1856
      %v1865 = vmax.f32 %v1344, %v1857
      %v1866 = vmax.f32 %v1345, %v1858
      %v1867 = vmax.f32 %v1346, %v1859
      %v1868 = vmax.f32 %v1347, %v1860
      %v1869 = vmax.f32 %v1348, %v1861
      %v1870 = vmax.f32 %v1349, %v1862
      %v1871 = vmax.f32 %v1350, %v1863
      %v1872 = vmax.f32 %v1864, %v1868
      %v1873 = vmax.f32 %v1865, %v1869
      %v1874 = vmax.f32 %v1866, %v1870
      %v1875 = vmax.f32 %v1867, %v1871
      %v1876 = vmax.f32 %v1872, 0.0
      %v1877 = vmax.f32 %v1873, 0.0
      %v1878 = vmax.f32 %v1874, 0.0
      %v1879 = vmax.f32 %v1875, 0.0
      %v1880 = vpack.c.bf16 %v1876, %v1876
      %v1881 = vpack.c.bf16 %v1877, %v1877
      %v1882 = vpack.c.bf16 %v1878, %v1878
      %v1883 = vpack.c.bf16 %v1879, %v1879
      %v1884 = vld [vmem:[%s2] sm:$0xff]
      %v1885 = vld [vmem:[%s2 + $0x8] sm:$0xff]
      %v1886 = vld [vmem:[%s2 + $0x10] sm:$0xff]
      %v1887 = vld [vmem:[%s2 + $0x18] sm:$0xff]
      %v1888 = vld [vmem:[%s2 + $0x20] sm:$0xff]
      %v1889 = vld [vmem:[%s2 + $0x28] sm:$0xff]
      %v1890 = vld [vmem:[%s2 + $0x30] sm:$0xff]
      %v1891 = vld [vmem:[%s2 + $0x38] sm:$0xff]
      %v1892 = vld [vmem:[%s2 + $0x40] sm:$0xff]
      %v1893 = vld [vmem:[%s2 + $0x48] sm:$0xff]
      %v1894 = vld [vmem:[%s2 + $0x50] sm:$0xff]
      %v1895 = vld [vmem:[%s2 + $0x58] sm:$0xff]
      %v1896 = vld [vmem:[%s2 + $0x60] sm:$0xff]
      %v1897 = vld [vmem:[%s2 + $0x68] sm:$0xff]
      %v1898 = vld [vmem:[%s2 + $0x70] sm:$0xff]
      %v1899 = vld [vmem:[%s2 + $0x78] sm:$0xff]
      %v1900 = vld [vmem:[%s2 + $0x80] sm:$0xff]
      %v1901 = vld [vmem:[%s2 + $0x88] sm:$0xff]
      %v1902 = vld [vmem:[%s2 + $0x90] sm:$0xff]
      %v1903 = vld [vmem:[%s2 + $0x98] sm:$0xff]
      %v1904 = vld [vmem:[%s2 + $0xa0] sm:$0xff]
      %v1905 = vld [vmem:[%s2 + $0xa8] sm:$0xff]
      %v1906 = vld [vmem:[%s2 + $0xb0] sm:$0xff]
      %v1907 = vld [vmem:[%s2 + $0xb8] sm:$0xff]
      %v1908 = vld [vmem:[%s2 + $0xc0] sm:$0xff]
      %v1909 = vld [vmem:[%s2 + $0xc8] sm:$0xff]
      %v1910 = vld [vmem:[%s2 + $0xd0] sm:$0xff]
      %v1911 = vld [vmem:[%s2 + $0xd8] sm:$0xff]
      %v1912 = vld [vmem:[%s2 + $0xe0] sm:$0xff]
      %v1913 = vld [vmem:[%s2 + $0xe8] sm:$0xff]
      %v1914 = vld [vmem:[%s2 + $0xf0] sm:$0xff]
      %v1915 = vld [vmem:[%s2 + $0xf8] sm:$0xff]
      %v1916 = vld [vmem:[%s2 + $0x100] sm:$0xff]
      %v1917 = vld [vmem:[%s2 + $0x108] sm:$0xff]
      %v1918 = vld [vmem:[%s2 + $0x110] sm:$0xff]
      %v1919 = vld [vmem:[%s2 + $0x118] sm:$0xff]
      %v1920 = vld [vmem:[%s2 + $0x120] sm:$0xff]
      %v1921 = vld [vmem:[%s2 + $0x128] sm:$0xff]
      %v1922 = vld [vmem:[%s2 + $0x130] sm:$0xff]
      %v1923 = vld [vmem:[%s2 + $0x138] sm:$0xff]
      %v1924 = vld [vmem:[%s2 + $0x140] sm:$0xff]
      %v1925 = vld [vmem:[%s2 + $0x148] sm:$0xff]
      %v1926 = vld [vmem:[%s2 + $0x150] sm:$0xff]
      %v1927 = vld [vmem:[%s2 + $0x158] sm:$0xff]
      %v1928 = vld [vmem:[%s2 + $0x160] sm:$0xff]
      %v1929 = vld [vmem:[%s2 + $0x168] sm:$0xff]
      %v1930 = vld [vmem:[%s2 + $0x170] sm:$0xff]
      %v1931 = vld [vmem:[%s2 + $0x178] sm:$0xff]
      %v1932 = vld [vmem:[%s2 + $0x180] sm:$0xff]
      %v1933 = vld [vmem:[%s2 + $0x188] sm:$0xff]
      %v1934 = vld [vmem:[%s2 + $0x190] sm:$0xff]
      %v1935 = vld [vmem:[%s2 + $0x198] sm:$0xff]
      %v1936 = vld [vmem:[%s2 + $0x1a0] sm:$0xff]
      %v1937 = vld [vmem:[%s2 + $0x1a8] sm:$0xff]
      %v1938 = vld [vmem:[%s2 + $0x1b0] sm:$0xff]
      %v1939 = vld [vmem:[%s2 + $0x1b8] sm:$0xff]
      %v1940 = vld [vmem:[%s2 + $0x1c0] sm:$0xff]
      %v1941 = vld [vmem:[%s2 + $0x1c8] sm:$0xff]
      %v1942 = vld [vmem:[%s2 + $0x1d0] sm:$0xff]
      %v1943 = vld [vmem:[%s2 + $0x1d8] sm:$0xff]
      %v1944 = vld [vmem:[%s2 + $0x1e0] sm:$0xff]
      %v1945 = vld [vmem:[%s2 + $0x1e8] sm:$0xff]
      %v1946 = vld [vmem:[%s2 + $0x1f0] sm:$0xff]
      %v1947 = vld [vmem:[%s2 + $0x1f8] sm:$0xff]
      %v1948 = vld [vmem:[%s2 + $0x200] sm:$0xff]
      %v1949 = vld [vmem:[%s2 + $0x208] sm:$0xff]
      %v1950 = vld [vmem:[%s2 + $0x210] sm:$0xff]
      %v1951 = vld [vmem:[%s2 + $0x218] sm:$0xff]
      %v1952 = vld [vmem:[%s2 + $0x220] sm:$0xff]
      %v1953 = vld [vmem:[%s2 + $0x228] sm:$0xff]
      %v1954 = vld [vmem:[%s2 + $0x230] sm:$0xff]
      %v1955 = vld [vmem:[%s2 + $0x238] sm:$0xff]
      %v1956 = vld [vmem:[%s2 + $0x240] sm:$0xff]
      %v1957 = vld [vmem:[%s2 + $0x248] sm:$0xff]
      %v1958 = vld [vmem:[%s2 + $0x250] sm:$0xff]
      %v1959 = vld [vmem:[%s2 + $0x258] sm:$0xff]
      %v1960 = vld [vmem:[%s2 + $0x260] sm:$0xff]
      %v1961 = vld [vmem:[%s2 + $0x268] sm:$0xff]
      %v1962 = vld [vmem:[%s2 + $0x270] sm:$0xff]
      %v1963 = vld [vmem:[%s2 + $0x278] sm:$0xff]
      %v1964 = vld [vmem:[%s2 + $0x280] sm:$0xff]
      %v1965 = vld [vmem:[%s2 + $0x288] sm:$0xff]
      %v1966 = vld [vmem:[%s2 + $0x290] sm:$0xff]
      %v1967 = vld [vmem:[%s2 + $0x298] sm:$0xff]
      %v1968 = vld [vmem:[%s2 + $0x2a0] sm:$0xff]
      %v1969 = vld [vmem:[%s2 + $0x2a8] sm:$0xff]
      %v1970 = vld [vmem:[%s2 + $0x2b0] sm:$0xff]
      %v1971 = vld [vmem:[%s2 + $0x2b8] sm:$0xff]
      %v1972 = vld [vmem:[%s2 + $0x2c0] sm:$0xff]
      %v1973 = vld [vmem:[%s2 + $0x2c8] sm:$0xff]
      %v1974 = vld [vmem:[%s2 + $0x2d0] sm:$0xff]
      %v1975 = vld [vmem:[%s2 + $0x2d8] sm:$0xff]
      %v1976 = vld [vmem:[%s2 + $0x2e0] sm:$0xff]
      %v1977 = vld [vmem:[%s2 + $0x2e8] sm:$0xff]
      %v1978 = vld [vmem:[%s2 + $0x2f0] sm:$0xff]
      %v1979 = vld [vmem:[%s2 + $0x2f8] sm:$0xff]
      %v1980 = vld [vmem:[%s2 + $0x300] sm:$0xff]
      %v1981 = vld [vmem:[%s2 + $0x308] sm:$0xff]
      %v1982 = vld [vmem:[%s2 + $0x310] sm:$0xff]
      %v1983 = vld [vmem:[%s2 + $0x318] sm:$0xff]
      %v1984 = vld [vmem:[%s2 + $0x320] sm:$0xff]
      %v1985 = vld [vmem:[%s2 + $0x328] sm:$0xff]
      %v1986 = vld [vmem:[%s2 + $0x330] sm:$0xff]
      %v1987 = vld [vmem:[%s2 + $0x338] sm:$0xff]
      %v1988 = vld [vmem:[%s2 + $0x340] sm:$0xff]
      %v1989 = vld [vmem:[%s2 + $0x348] sm:$0xff]
      %v1990 = vld [vmem:[%s2 + $0x350] sm:$0xff]
      %v1991 = vld [vmem:[%s2 + $0x358] sm:$0xff]
      %v1992 = vld [vmem:[%s2 + $0x360] sm:$0xff]
      %v1993 = vld [vmem:[%s2 + $0x368] sm:$0xff]
      %v1994 = vld [vmem:[%s2 + $0x370] sm:$0xff]
      %v1995 = vld [vmem:[%s2 + $0x378] sm:$0xff]
      %v1996 = vld [vmem:[%s2 + $0x380] sm:$0xff]
      %v1997 = vld [vmem:[%s2 + $0x388] sm:$0xff]
      %v1998 = vld [vmem:[%s2 + $0x390] sm:$0xff]
      %v1999 = vld [vmem:[%s2 + $0x398] sm:$0xff]
      %v2000 = vld [vmem:[%s2 + $0x3a0] sm:$0xff]
      %v2001 = vld [vmem:[%s2 + $0x3a8] sm:$0xff]
      %v2002 = vld [vmem:[%s2 + $0x3b0] sm:$0xff]
      %v2003 = vld [vmem:[%s2 + $0x3b8] sm:$0xff]
      %v2004 = vld [vmem:[%s2 + $0x3c0] sm:$0xff]
      %v2005 = vld [vmem:[%s2 + $0x3c8] sm:$0xff]
      %v2006 = vld [vmem:[%s2 + $0x3d0] sm:$0xff]
      %v2007 = vld [vmem:[%s2 + $0x3d8] sm:$0xff]
      %v2008 = vld [vmem:[%s2 + $0x3e0] sm:$0xff]
      %v2009 = vld [vmem:[%s2 + $0x3e8] sm:$0xff]
      %v2010 = vld [vmem:[%s2 + $0x3f0] sm:$0xff]
      %v2011 = vld [vmem:[%s2 + $0x3f8] sm:$0xff]
      %v2013 = vshrl.u32 %v1880, 16
      %v2015 = vshll.u32 %v1880, 16
      %v2017 = vrot.slane %v2015, 1
      %v2018 = vor.u32 %v2013, %v2017
      %v2020 = vshrl.u32 %v1881, 16
      %v2022 = vshll.u32 %v1881, 16
      %v2024 = vrot.slane %v2022, 1
      %v2025 = vor.u32 %v2020, %v2024
      %v2027 = vshrl.u32 %v1882, 16
      %v2029 = vshll.u32 %v1882, 16
      %v2031 = vrot.slane %v2029, 1
      %v2032 = vor.u32 %v2027, %v2031
      %v2034 = vshrl.u32 %v1883, 16
      %v2036 = vshll.u32 %v1883, 16
      %v2038 = vrot.slane %v2036, 1
      %v2039 = vor.u32 %v2034, %v2038
      %v2108 = vunpack.c.l.b16 %v1948
      %v2109 = vunpack.c.h.b16 %v1948
      %v2110 = vunpack.c.l.b16 %v1949
      %v2111 = vunpack.c.h.b16 %v1949
      %v2112 = vunpack.c.l.b16 %v1950
      %v2113 = vunpack.c.h.b16 %v1950
      %v2114 = vunpack.c.l.b16 %v1951
      %v2115 = vunpack.c.h.b16 %v1951
      %v2116 = vunpack.c.l.b16 %v1952
      %v2117 = vunpack.c.h.b16 %v1952
      %v2118 = vunpack.c.l.b16 %v1953
      %v2119 = vunpack.c.h.b16 %v1953
      %v2120 = vunpack.c.l.b16 %v1954
      %v2121 = vunpack.c.h.b16 %v1954
      %v2122 = vunpack.c.l.b16 %v1955
      %v2123 = vunpack.c.h.b16 %v1955
      %v2124 = vunpack.c.l.b16 %v1956
      %v2125 = vunpack.c.h.b16 %v1956
      %v2126 = vunpack.c.l.b16 %v1957
      %v2127 = vunpack.c.h.b16 %v1957
      %v2128 = vunpack.c.l.b16 %v1958
      %v2129 = vunpack.c.h.b16 %v1958
      %v2130 = vunpack.c.l.b16 %v1959
      %v2131 = vunpack.c.h.b16 %v1959
      %v2132 = vunpack.c.l.b16 %v1960
      %v2133 = vunpack.c.h.b16 %v1960
      %v2134 = vunpack.c.l.b16 %v1961
      %v2135 = vunpack.c.h.b16 %v1961
      %v2136 = vunpack.c.l.b16 %v1962
      %v2137 = vunpack.c.h.b16 %v1962
      %v2138 = vunpack.c.l.b16 %v1963
      %v2139 = vunpack.c.h.b16 %v1963
      %v2140 = vunpack.c.l.b16 %v1964
      %v2141 = vunpack.c.h.b16 %v1964
      %v2142 = vunpack.c.l.b16 %v1965
      %v2143 = vunpack.c.h.b16 %v1965
      %v2144 = vunpack.c.l.b16 %v1966
      %v2145 = vunpack.c.h.b16 %v1966
      %v2146 = vunpack.c.l.b16 %v1967
      %v2147 = vunpack.c.h.b16 %v1967
      %v2148 = vunpack.c.l.b16 %v1968
      %v2149 = vunpack.c.h.b16 %v1968
      %v2150 = vunpack.c.l.b16 %v1969
      %v2151 = vunpack.c.h.b16 %v1969
      %v2152 = vunpack.c.l.b16 %v1970
      %v2153 = vunpack.c.h.b16 %v1970
      %v2154 = vunpack.c.l.b16 %v1971
      %v2155 = vunpack.c.h.b16 %v1971
      %v2156 = vunpack.c.l.b16 %v1972
      %v2157 = vunpack.c.h.b16 %v1972
      %v2158 = vunpack.c.l.b16 %v1973
      %v2159 = vunpack.c.h.b16 %v1973
      %v2160 = vunpack.c.l.b16 %v1974
      %v2161 = vunpack.c.h.b16 %v1974
      %v2162 = vunpack.c.l.b16 %v1975
      %v2163 = vunpack.c.h.b16 %v1975
      %v2164 = vunpack.c.l.b16 %v1976
      %v2165 = vunpack.c.h.b16 %v1976
      %v2166 = vunpack.c.l.b16 %v1977
      %v2167 = vunpack.c.h.b16 %v1977
      %v2168 = vunpack.c.l.b16 %v1978
      %v2169 = vunpack.c.h.b16 %v1978
      %v2170 = vunpack.c.l.b16 %v1979
      %v2171 = vunpack.c.h.b16 %v1979
      %v2172 = vunpack.c.l.b16 %v1980
      %v2173 = vunpack.c.h.b16 %v1980
      %v2174 = vunpack.c.l.b16 %v1981
      %v2175 = vunpack.c.h.b16 %v1981
      %v2176 = vunpack.c.l.b16 %v1982
      %v2177 = vunpack.c.h.b16 %v1982
      %v2178 = vunpack.c.l.b16 %v1983
      %v2179 = vunpack.c.h.b16 %v1983
      %v2180 = vunpack.c.l.b16 %v1984
      %v2181 = vunpack.c.h.b16 %v1984
      %v2182 = vunpack.c.l.b16 %v1985
      %v2183 = vunpack.c.h.b16 %v1985
      %v2184 = vunpack.c.l.b16 %v1986
      %v2185 = vunpack.c.h.b16 %v1986
      %v2186 = vunpack.c.l.b16 %v1987
      %v2187 = vunpack.c.h.b16 %v1987
      %v2188 = vunpack.c.l.b16 %v1988
      %v2189 = vunpack.c.h.b16 %v1988
      %v2190 = vunpack.c.l.b16 %v1989
      %v2191 = vunpack.c.h.b16 %v1989
      %v2192 = vunpack.c.l.b16 %v1990
      %v2193 = vunpack.c.h.b16 %v1990
      %v2194 = vunpack.c.l.b16 %v1991
      %v2195 = vunpack.c.h.b16 %v1991
      %v2196 = vunpack.c.l.b16 %v1992
      %v2197 = vunpack.c.h.b16 %v1992
      %v2198 = vunpack.c.l.b16 %v1993
      %v2199 = vunpack.c.h.b16 %v1993
      %v2200 = vunpack.c.l.b16 %v1994
      %v2201 = vunpack.c.h.b16 %v1994
      %v2202 = vunpack.c.l.b16 %v1995
      %v2203 = vunpack.c.h.b16 %v1995
      %v2204 = vunpack.c.l.b16 %v1996
      %v2205 = vunpack.c.h.b16 %v1996
      %v2206 = vunpack.c.l.b16 %v1997
      %v2207 = vunpack.c.h.b16 %v1997
      %v2208 = vunpack.c.l.b16 %v1998
      %v2209 = vunpack.c.h.b16 %v1998
      %v2210 = vunpack.c.l.b16 %v1999
      %v2211 = vunpack.c.h.b16 %v1999
      %v2212 = vunpack.c.l.b16 %v2000
      %v2213 = vunpack.c.h.b16 %v2000
      %v2214 = vunpack.c.l.b16 %v2001
      %v2215 = vunpack.c.h.b16 %v2001
      %v2216 = vunpack.c.l.b16 %v2002
      %v2217 = vunpack.c.h.b16 %v2002
      %v2218 = vunpack.c.l.b16 %v2003
      %v2219 = vunpack.c.h.b16 %v2003
      %v2220 = vunpack.c.l.b16 %v2004
      %v2221 = vunpack.c.h.b16 %v2004
      %v2222 = vunpack.c.l.b16 %v2005
      %v2223 = vunpack.c.h.b16 %v2005
      %v2224 = vunpack.c.l.b16 %v2006
      %v2225 = vunpack.c.h.b16 %v2006
      %v2226 = vunpack.c.l.b16 %v2007
      %v2227 = vunpack.c.h.b16 %v2007
      %v2228 = vunpack.c.l.b16 %v2008
      %v2229 = vunpack.c.h.b16 %v2008
      %v2230 = vunpack.c.l.b16 %v2009
      %v2231 = vunpack.c.h.b16 %v2009
      %v2232 = vunpack.c.l.b16 %v2010
      %v2233 = vunpack.c.h.b16 %v2010
      %v2234 = vunpack.c.l.b16 %v2011
      %v2235 = vunpack.c.h.b16 %v2011
      %v2236 = vpack.c.b16 %v2110, %v2108
      %v2237 = vpack.c.b16 %v2111, %v2109
      %v2238 = vpack.c.b16 %v2114, %v2112
      %v2239 = vpack.c.b16 %v2115, %v2113
      %v2240 = vpack.c.b16 %v2118, %v2116
      %v2241 = vpack.c.b16 %v2119, %v2117
      %v2242 = vpack.c.b16 %v2122, %v2120
      %v2243 = vpack.c.b16 %v2123, %v2121
      %v2244 = vpack.c.b16 %v2126, %v2124
      %v2245 = vpack.c.b16 %v2127, %v2125
      %v2246 = vpack.c.b16 %v2130, %v2128
      %v2247 = vpack.c.b16 %v2131, %v2129
      %v2248 = vpack.c.b16 %v2134, %v2132
      %v2249 = vpack.c.b16 %v2135, %v2133
      %v2250 = vpack.c.b16 %v2138, %v2136
      %v2251 = vpack.c.b16 %v2139, %v2137
      %v2252 = vpack.c.b16 %v2142, %v2140
      %v2253 = vpack.c.b16 %v2143, %v2141
      %v2254 = vpack.c.b16 %v2146, %v2144
      %v2255 = vpack.c.b16 %v2147, %v2145
      %v2256 = vpack.c.b16 %v2150, %v2148
      %v2257 = vpack.c.b16 %v2151, %v2149
      %v2258 = vpack.c.b16 %v2154, %v2152
      %v2259 = vpack.c.b16 %v2155, %v2153
      %v2260 = vpack.c.b16 %v2158, %v2156
      %v2261 = vpack.c.b16 %v2159, %v2157
      %v2262 = vpack.c.b16 %v2162, %v2160
      %v2263 = vpack.c.b16 %v2163, %v2161
      %v2264 = vpack.c.b16 %v2166, %v2164
      %v2265 = vpack.c.b16 %v2167, %v2165
      %v2266 = vpack.c.b16 %v2170, %v2168
      %v2267 = vpack.c.b16 %v2171, %v2169
      %v2268 = vpack.c.b16 %v2174, %v2172
      %v2269 = vpack.c.b16 %v2175, %v2173
      %v2270 = vpack.c.b16 %v2178, %v2176
      %v2271 = vpack.c.b16 %v2179, %v2177
      %v2272 = vpack.c.b16 %v2182, %v2180
      %v2273 = vpack.c.b16 %v2183, %v2181
      %v2274 = vpack.c.b16 %v2186, %v2184
      %v2275 = vpack.c.b16 %v2187, %v2185
      %v2276 = vpack.c.b16 %v2190, %v2188
      %v2277 = vpack.c.b16 %v2191, %v2189
      %v2278 = vpack.c.b16 %v2194, %v2192
      %v2279 = vpack.c.b16 %v2195, %v2193
      %v2280 = vpack.c.b16 %v2198, %v2196
      %v2281 = vpack.c.b16 %v2199, %v2197
      %v2282 = vpack.c.b16 %v2202, %v2200
      %v2283 = vpack.c.b16 %v2203, %v2201
      %v2284 = vpack.c.b16 %v2206, %v2204
      %v2285 = vpack.c.b16 %v2207, %v2205
      %v2286 = vpack.c.b16 %v2210, %v2208
      %v2287 = vpack.c.b16 %v2211, %v2209
      %v2288 = vpack.c.b16 %v2214, %v2212
      %v2289 = vpack.c.b16 %v2215, %v2213
      %v2290 = vpack.c.b16 %v2218, %v2216
      %v2291 = vpack.c.b16 %v2219, %v2217
      %v2292 = vpack.c.b16 %v2222, %v2220
      %v2293 = vpack.c.b16 %v2223, %v2221
      %v2294 = vpack.c.b16 %v2226, %v2224
      %v2295 = vpack.c.b16 %v2227, %v2225
      %v2296 = vpack.c.b16 %v2230, %v2228
      %v2297 = vpack.c.b16 %v2231, %v2229
      %v2298 = vpack.c.b16 %v2234, %v2232
      %v2299 = vpack.c.b16 %v2235, %v2233
      %2364 = vmatprep.subr.bf16.mxu0 %v2237
      %2365 = vmatpush1.bf16.msra.mxu0 %v2236
      %2366 = vmatprep.subr.bf16.mxu0 %v2239
      %2367 = vmatpush1.bf16.msra.mxu0 %v2238
      %2368 = vmatprep.subr.bf16.mxu0 %v2241
      %2369 = vmatpush1.bf16.msra.mxu0 %v2240
      %2370 = vmatprep.subr.bf16.mxu0 %v2243
      %2371 = vmatpush1.bf16.msra.mxu0 %v2242
      %2372 = vmatprep.subr.bf16.mxu0 %v2245
      %2373 = vmatpush1.bf16.msra.mxu0 %v2244
      %2374 = vmatprep.subr.bf16.mxu0 %v2247
      %2375 = vmatpush1.bf16.msra.mxu0 %v2246
      %2376 = vmatprep.subr.bf16.mxu0 %v2249
      %2377 = vmatpush1.bf16.msra.mxu0 %v2248
      %2378 = vmatprep.subr.bf16.mxu0 %v2251
      %2379 = vmatpush1.bf16.msra.mxu0 %v2250
      %2380 = vmatprep.subr.bf16.mxu0 %v2253
      %2381 = vmatpush1.bf16.msra.mxu0 %v2252
      %2382 = vmatprep.subr.bf16.mxu0 %v2255
      %2383 = vmatpush1.bf16.msra.mxu0 %v2254
      %2384 = vmatprep.subr.bf16.mxu0 %v2257
      %2385 = vmatpush1.bf16.msra.mxu0 %v2256
      %2386 = vmatprep.subr.bf16.mxu0 %v2259
      %2387 = vmatpush1.bf16.msra.mxu0 %v2258
      %2388 = vmatprep.subr.bf16.mxu0 %v2261
      %2389 = vmatpush1.bf16.msra.mxu0 %v2260
      %2390 = vmatprep.subr.bf16.mxu0 %v2263
      %2391 = vmatpush1.bf16.msra.mxu0 %v2262
      %2392 = vmatprep.subr.bf16.mxu0 %v2265
      %2393 = vmatpush1.bf16.msra.mxu0 %v2264
      %2394 = vmatprep.subr.bf16.mxu0 %v2267
      %2395 = vmatpush1.bf16.msra.mxu0 %v2266
      %2396 = vmatprep.mubr.bf16.mxu0 %v2025
      %2397 = vmatmul.mubr.bf16.gmra.mrb[0].mxu0 %v2018
      %v2398 = vpop.f32.mrb[0].mxu0
      %v2399 = vadd.f32 0.0, %v2398
      %v2400 = vpop.f32.mrb[0].mxu0
      %v2401 = vadd.f32 0.0, %v2400
      %v2402 = vpop.f32.mrb[0].mxu0
      %v2403 = vpop.f32.mrb[0].mxu0
      %2404 = vdwg.mxu0
      %2405 = vmatprep.subr.bf16.mxu0 %v2269
      %2406 = vmatpush1.bf16.msra.mxu0 %v2268
      %2407 = vmatprep.subr.bf16.mxu0 %v2271
      %2408 = vmatpush1.bf16.msra.mxu0 %v2270
      %2409 = vmatprep.subr.bf16.mxu0 %v2273
      %2410 = vmatpush1.bf16.msra.mxu0 %v2272
      %2411 = vmatprep.subr.bf16.mxu0 %v2275
      %2412 = vmatpush1.bf16.msra.mxu0 %v2274
      %2413 = vmatprep.subr.bf16.mxu0 %v2277
      %2414 = vmatpush1.bf16.msra.mxu0 %v2276
      %2415 = vmatprep.subr.bf16.mxu0 %v2279
      %2416 = vmatpush1.bf16.msra.mxu0 %v2278
      %2417 = vmatprep.subr.bf16.mxu0 %v2281
      %2418 = vmatpush1.bf16.msra.mxu0 %v2280
      %2419 = vmatprep.subr.bf16.mxu0 %v2283
      %2420 = vmatpush1.bf16.msra.mxu0 %v2282
      %2421 = vmatprep.subr.bf16.mxu0 %v2285
      %2422 = vmatpush1.bf16.msra.mxu0 %v2284
      %2423 = vmatprep.subr.bf16.mxu0 %v2287
      %2424 = vmatpush1.bf16.msra.mxu0 %v2286
      %2425 = vmatprep.subr.bf16.mxu0 %v2289
      %2426 = vmatpush1.bf16.msra.mxu0 %v2288
      %2427 = vmatprep.subr.bf16.mxu0 %v2291
      %2428 = vmatpush1.bf16.msra.mxu0 %v2290
      %2429 = vmatprep.subr.bf16.mxu0 %v2293
      %2430 = vmatpush1.bf16.msra.mxu0 %v2292
      %2431 = vmatprep.subr.bf16.mxu0 %v2295
      %2432 = vmatpush1.bf16.msra.mxu0 %v2294
      %2433 = vmatprep.subr.bf16.mxu0 %v2297
      %2434 = vmatpush1.bf16.msra.mxu0 %v2296
      %2435 = vmatprep.subr.bf16.mxu0 %v2299
      %2436 = vmatpush1.bf16.msra.mxu0 %v2298
      %2437 = vmatprep.mubr.bf16.mxu0 %v2039
      %2438 = vmatmul.mubr.bf16.gmra.mrb[0].mxu0 %v2032
      %v2439 = vpop.f32.mrb[0].mxu0
      %v2440 = vadd.f32 %v2399, %v2439
      %v2441 = vpop.f32.mrb[0].mxu0
      %v2442 = vadd.f32 %v2401, %v2441
      %v2443 = vpop.f32.mrb[0].mxu0
      %v2444 = vpop.f32.mrb[0].mxu0
      %2445 = vdwg.mxu0
      %v2510 = vunpack.c.l.b16 %v1884
      %v2511 = vunpack.c.h.b16 %v1884
      %v2512 = vunpack.c.l.b16 %v1885
      %v2513 = vunpack.c.h.b16 %v1885
      %v2514 = vunpack.c.l.b16 %v1886
      %v2515 = vunpack.c.h.b16 %v1886
      %v2516 = vunpack.c.l.b16 %v1887
      %v2517 = vunpack.c.h.b16 %v1887
      %v2518 = vunpack.c.l.b16 %v1888
      %v2519 = vunpack.c.h.b16 %v1888
      %v2520 = vunpack.c.l.b16 %v1889
      %v2521 = vunpack.c.h.b16 %v1889
      %v2522 = vunpack.c.l.b16 %v1890
      %v2523 = vunpack.c.h.b16 %v1890
      %v2524 = vunpack.c.l.b16 %v1891
      %v2525 = vunpack.c.h.b16 %v1891
      %v2526 = vunpack.c.l.b16 %v1892
      %v2527 = vunpack.c.h.b16 %v1892
      %v2528 = vunpack.c.l.b16 %v1893
      %v2529 = vunpack.c.h.b16 %v1893
      %v2530 = vunpack.c.l.b16 %v1894
      %v2531 = vunpack.c.h.b16 %v1894
      %v2532 = vunpack.c.l.b16 %v1895
      %v2533 = vunpack.c.h.b16 %v1895
      %v2534 = vunpack.c.l.b16 %v1896
      %v2535 = vunpack.c.h.b16 %v1896
      %v2536 = vunpack.c.l.b16 %v1897
      %v2537 = vunpack.c.h.b16 %v1897
      %v2538 = vunpack.c.l.b16 %v1898
      %v2539 = vunpack.c.h.b16 %v1898
      %v2540 = vunpack.c.l.b16 %v1899
      %v2541 = vunpack.c.h.b16 %v1899
      %v2542 = vunpack.c.l.b16 %v1900
      %v2543 = vunpack.c.h.b16 %v1900
      %v2544 = vunpack.c.l.b16 %v1901
      %v2545 = vunpack.c.h.b16 %v1901
      %v2546 = vunpack.c.l.b16 %v1902
      %v2547 = vunpack.c.h.b16 %v1902
      %v2548 = vunpack.c.l.b16 %v1903
      %v2549 = vunpack.c.h.b16 %v1903
      %v2550 = vunpack.c.l.b16 %v1904
      %v2551 = vunpack.c.h.b16 %v1904
      %v2552 = vunpack.c.l.b16 %v1905
      %v2553 = vunpack.c.h.b16 %v1905
      %v2554 = vunpack.c.l.b16 %v1906
      %v2555 = vunpack.c.h.b16 %v1906
      %v2556 = vunpack.c.l.b16 %v1907
      %v2557 = vunpack.c.h.b16 %v1907
      %v2558 = vunpack.c.l.b16 %v1908
      %v2559 = vunpack.c.h.b16 %v1908
      %v2560 = vunpack.c.l.b16 %v1909
      %v2561 = vunpack.c.h.b16 %v1909
      %v2562 = vunpack.c.l.b16 %v1910
      %v2563 = vunpack.c.h.b16 %v1910
      %v2564 = vunpack.c.l.b16 %v1911
      %v2565 = vunpack.c.h.b16 %v1911
      %v2566 = vunpack.c.l.b16 %v1912
      %v2567 = vunpack.c.h.b16 %v1912
      %v2568 = vunpack.c.l.b16 %v1913
      %v2569 = vunpack.c.h.b16 %v1913
      %v2570 = vunpack.c.l.b16 %v1914
      %v2571 = vunpack.c.h.b16 %v1914
      %v2572 = vunpack.c.l.b16 %v1915
      %v2573 = vunpack.c.h.b16 %v1915
      %v2574 = vunpack.c.l.b16 %v1916
      %v2575 = vunpack.c.h.b16 %v1916
      %v2576 = vunpack.c.l.b16 %v1917
      %v2577 = vunpack.c.h.b16 %v1917
      %v2578 = vunpack.c.l.b16 %v1918
      %v2579 = vunpack.c.h.b16 %v1918
      %v2580 = vunpack.c.l.b16 %v1919
      %v2581 = vunpack.c.h.b16 %v1919
      %v2582 = vunpack.c.l.b16 %v1920
      %v2583 = vunpack.c.h.b16 %v1920
      %v2584 = vunpack.c.l.b16 %v1921
      %v2585 = vunpack.c.h.b16 %v1921
      %v2586 = vunpack.c.l.b16 %v1922
      %v2587 = vunpack.c.h.b16 %v1922
      %v2588 = vunpack.c.l.b16 %v1923
      %v2589 = vunpack.c.h.b16 %v1923
      %v2590 = vunpack.c.l.b16 %v1924
      %v2591 = vunpack.c.h.b16 %v1924
      %v2592 = vunpack.c.l.b16 %v1925
      %v2593 = vunpack.c.h.b16 %v1925
      %v2594 = vunpack.c.l.b16 %v1926
      %v2595 = vunpack.c.h.b16 %v1926
      %v2596 = vunpack.c.l.b16 %v1927
      %v2597 = vunpack.c.h.b16 %v1927
      %v2598 = vunpack.c.l.b16 %v1928
      %v2599 = vunpack.c.h.b16 %v1928
      %v2600 = vunpack.c.l.b16 %v1929
      %v2601 = vunpack.c.h.b16 %v1929
      %v2602 = vunpack.c.l.b16 %v1930
      %v2603 = vunpack.c.h.b16 %v1930
      %v2604 = vunpack.c.l.b16 %v1931
      %v2605 = vunpack.c.h.b16 %v1931
      %v2606 = vunpack.c.l.b16 %v1932
      %v2607 = vunpack.c.h.b16 %v1932
      %v2608 = vunpack.c.l.b16 %v1933
      %v2609 = vunpack.c.h.b16 %v1933
      %v2610 = vunpack.c.l.b16 %v1934
      %v2611 = vunpack.c.h.b16 %v1934
      %v2612 = vunpack.c.l.b16 %v1935
      %v2613 = vunpack.c.h.b16 %v1935
      %v2614 = vunpack.c.l.b16 %v1936
      %v2615 = vunpack.c.h.b16 %v1936
      %v2616 = vunpack.c.l.b16 %v1937
      %v2617 = vunpack.c.h.b16 %v1937
      %v2618 = vunpack.c.l.b16 %v1938
      %v2619 = vunpack.c.h.b16 %v1938
      %v2620 = vunpack.c.l.b16 %v1939
      %v2621 = vunpack.c.h.b16 %v1939
      %v2622 = vunpack.c.l.b16 %v1940
      %v2623 = vunpack.c.h.b16 %v1940
      %v2624 = vunpack.c.l.b16 %v1941
      %v2625 = vunpack.c.h.b16 %v1941
      %v2626 = vunpack.c.l.b16 %v1942
      %v2627 = vunpack.c.h.b16 %v1942
      %v2628 = vunpack.c.l.b16 %v1943
      %v2629 = vunpack.c.h.b16 %v1943
      %v2630 = vunpack.c.l.b16 %v1944
      %v2631 = vunpack.c.h.b16 %v1944
      %v2632 = vunpack.c.l.b16 %v1945
      %v2633 = vunpack.c.h.b16 %v1945
      %v2634 = vunpack.c.l.b16 %v1946
      %v2635 = vunpack.c.h.b16 %v1946
      %v2636 = vunpack.c.l.b16 %v1947
      %v2637 = vunpack.c.h.b16 %v1947
      %v2638 = vpack.c.b16 %v2512, %v2510
      %v2639 = vpack.c.b16 %v2513, %v2511
      %v2640 = vpack.c.b16 %v2516, %v2514
      %v2641 = vpack.c.b16 %v2517, %v2515
      %v2642 = vpack.c.b16 %v2520, %v2518
      %v2643 = vpack.c.b16 %v2521, %v2519
      %v2644 = vpack.c.b16 %v2524, %v2522
      %v2645 = vpack.c.b16 %v2525, %v2523
      %v2646 = vpack.c.b16 %v2528, %v2526
      %v2647 = vpack.c.b16 %v2529, %v2527
      %v2648 = vpack.c.b16 %v2532, %v2530
      %v2649 = vpack.c.b16 %v2533, %v2531
      %v2650 = vpack.c.b16 %v2536, %v2534
      %v2651 = vpack.c.b16 %v2537, %v2535
      %v2652 = vpack.c.b16 %v2540, %v2538
      %v2653 = vpack.c.b16 %v2541, %v2539
      %v2654 = vpack.c.b16 %v2544, %v2542
      %v2655 = vpack.c.b16 %v2545, %v2543
      %v2656 = vpack.c.b16 %v2548, %v2546
      %v2657 = vpack.c.b16 %v2549, %v2547
      %v2658 = vpack.c.b16 %v2552, %v2550
      %v2659 = vpack.c.b16 %v2553, %v2551
      %v2660 = vpack.c.b16 %v2556, %v2554
      %v2661 = vpack.c.b16 %v2557, %v2555
      %v2662 = vpack.c.b16 %v2560, %v2558
      %v2663 = vpack.c.b16 %v2561, %v2559
      %v2664 = vpack.c.b16 %v2564, %v2562
      %v2665 = vpack.c.b16 %v2565, %v2563
      %v2666 = vpack.c.b16 %v2568, %v2566
      %v2667 = vpack.c.b16 %v2569, %v2567
      %v2668 = vpack.c.b16 %v2572, %v2570
      %v2669 = vpack.c.b16 %v2573, %v2571
      %v2670 = vpack.c.b16 %v2576, %v2574
      %v2671 = vpack.c.b16 %v2577, %v2575
      %v2672 = vpack.c.b16 %v2580, %v2578
      %v2673 = vpack.c.b16 %v2581, %v2579
      %v2674 = vpack.c.b16 %v2584, %v2582
      %v2675 = vpack.c.b16 %v2585, %v2583
      %v2676 = vpack.c.b16 %v2588, %v2586
      %v2677 = vpack.c.b16 %v2589, %v2587
      %v2678 = vpack.c.b16 %v2592, %v2590
      %v2679 = vpack.c.b16 %v2593, %v2591
      %v2680 = vpack.c.b16 %v2596, %v2594
      %v2681 = vpack.c.b16 %v2597, %v2595
      %v2682 = vpack.c.b16 %v2600, %v2598
      %v2683 = vpack.c.b16 %v2601, %v2599
      %v2684 = vpack.c.b16 %v2604, %v2602
      %v2685 = vpack.c.b16 %v2605, %v2603
      %v2686 = vpack.c.b16 %v2608, %v2606
      %v2687 = vpack.c.b16 %v2609, %v2607
      %v2688 = vpack.c.b16 %v2612, %v2610
      %v2689 = vpack.c.b16 %v2613, %v2611
      %v2690 = vpack.c.b16 %v2616, %v2614
      %v2691 = vpack.c.b16 %v2617, %v2615
      %v2692 = vpack.c.b16 %v2620, %v2618
      %v2693 = vpack.c.b16 %v2621, %v2619
      %v2694 = vpack.c.b16 %v2624, %v2622
      %v2695 = vpack.c.b16 %v2625, %v2623
      %v2696 = vpack.c.b16 %v2628, %v2626
      %v2697 = vpack.c.b16 %v2629, %v2627
      %v2698 = vpack.c.b16 %v2632, %v2630
      %v2699 = vpack.c.b16 %v2633, %v2631
      %v2700 = vpack.c.b16 %v2636, %v2634
      %v2701 = vpack.c.b16 %v2637, %v2635
      %2766 = vmatprep.subr.bf16.mxu0 %v2639
      %2767 = vmatpush1.bf16.msra.mxu0 %v2638
      %2768 = vmatprep.subr.bf16.mxu0 %v2641
      %2769 = vmatpush1.bf16.msra.mxu0 %v2640
      %2770 = vmatprep.subr.bf16.mxu0 %v2643
      %2771 = vmatpush1.bf16.msra.mxu0 %v2642
      %2772 = vmatprep.subr.bf16.mxu0 %v2645
      %2773 = vmatpush1.bf16.msra.mxu0 %v2644
      %2774 = vmatprep.subr.bf16.mxu0 %v2647
      %2775 = vmatpush1.bf16.msra.mxu0 %v2646
      %2776 = vmatprep.subr.bf16.mxu0 %v2649
      %2777 = vmatpush1.bf16.msra.mxu0 %v2648
      %2778 = vmatprep.subr.bf16.mxu0 %v2651
      %2779 = vmatpush1.bf16.msra.mxu0 %v2650
      %2780 = vmatprep.subr.bf16.mxu0 %v2653
      %2781 = vmatpush1.bf16.msra.mxu0 %v2652
      %2782 = vmatprep.subr.bf16.mxu0 %v2655
      %2783 = vmatpush1.bf16.msra.mxu0 %v2654
      %2784 = vmatprep.subr.bf16.mxu0 %v2657
      %2785 = vmatpush1.bf16.msra.mxu0 %v2656
      %2786 = vmatprep.subr.bf16.mxu0 %v2659
      %2787 = vmatpush1.bf16.msra.mxu0 %v2658
      %2788 = vmatprep.subr.bf16.mxu0 %v2661
      %2789 = vmatpush1.bf16.msra.mxu0 %v2660
      %2790 = vmatprep.subr.bf16.mxu0 %v2663
      %2791 = vmatpush1.bf16.msra.mxu0 %v2662
      %2792 = vmatprep.subr.bf16.mxu0 %v2665
      %2793 = vmatpush1.bf16.msra.mxu0 %v2664
      %2794 = vmatprep.subr.bf16.mxu0 %v2667
      %2795 = vmatpush1.bf16.msra.mxu0 %v2666
      %2796 = vmatprep.subr.bf16.mxu0 %v2669
      %2797 = vmatpush1.bf16.msra.mxu0 %v2668
      %2798 = vmatprep.mubr.bf16.mxu0 %v1881
      %2799 = vmatmul.mubr.bf16.gmra.mrb[0].mxu0 %v1880
      %v2800 = vpop.f32.mrb[0].mxu0
      %v2801 = vadd.f32 %v2440, %v2800
      %v2802 = vpop.f32.mrb[0].mxu0
      %v2803 = vadd.f32 %v2442, %v2802
      %v2804 = vpop.f32.mrb[0].mxu0
      %v2805 = vpop.f32.mrb[0].mxu0
      %2806 = vdwg.mxu0
      %2807 = vmatprep.subr.bf16.mxu0 %v2671
      %2808 = vmatpush1.bf16.msra.mxu0 %v2670
      %2809 = vmatprep.subr.bf16.mxu0 %v2673
      %2810 = vmatpush1.bf16.msra.mxu0 %v2672
      %2811 = vmatprep.subr.bf16.mxu0 %v2675
      %2812 = vmatpush1.bf16.msra.mxu0 %v2674
      %2813 = vmatprep.subr.bf16.mxu0 %v2677
      %2814 = vmatpush1.bf16.msra.mxu0 %v2676
      %2815 = vmatprep.subr.bf16.mxu0 %v2679
      %2816 = vmatpush1.bf16.msra.mxu0 %v2678
      %2817 = vmatprep.subr.bf16.mxu0 %v2681
      %2818 = vmatpush1.bf16.msra.mxu0 %v2680
      %2819 = vmatprep.subr.bf16.mxu0 %v2683
      %2820 = vmatpush1.bf16.msra.mxu0 %v2682
      %2821 = vmatprep.subr.bf16.mxu0 %v2685
      %2822 = vmatpush1.bf16.msra.mxu0 %v2684
      %2823 = vmatprep.subr.bf16.mxu0 %v2687
      %2824 = vmatpush1.bf16.msra.mxu0 %v2686
      %2825 = vmatprep.subr.bf16.mxu0 %v2689
      %2826 = vmatpush1.bf16.msra.mxu0 %v2688
      %2827 = vmatprep.subr.bf16.mxu0 %v2691
      %2828 = vmatpush1.bf16.msra.mxu0 %v2690
      %2829 = vmatprep.subr.bf16.mxu0 %v2693
      %2830 = vmatpush1.bf16.msra.mxu0 %v2692
      %2831 = vmatprep.subr.bf16.mxu0 %v2695
      %2832 = vmatpush1.bf16.msra.mxu0 %v2694
      %2833 = vmatprep.subr.bf16.mxu0 %v2697
      %2834 = vmatpush1.bf16.msra.mxu0 %v2696
      %2835 = vmatprep.subr.bf16.mxu0 %v2699
      %2836 = vmatpush1.bf16.msra.mxu0 %v2698
      %2837 = vmatprep.subr.bf16.mxu0 %v2701
      %2838 = vmatpush1.bf16.msra.mxu0 %v2700
      %2839 = vmatprep.mubr.bf16.mxu0 %v1883
      %2840 = vmatmul.mubr.bf16.gmra.mrb[0].mxu0 %v1882
      %v2841 = vpop.f32.mrb[0].mxu0
      %v2842 = vadd.f32 %v2801, %v2841
      %v2843 = vpop.f32.mrb[0].mxu0
      %v2844 = vadd.f32 %v2803, %v2843
      %v2845 = vpop.f32.mrb[0].mxu0
      %v2846 = vpop.f32.mrb[0].mxu0
      %2847 = vdwg.mxu0
      %v2848 = vld [vmem:[%s3] sm:$0x3]
      %v2850 = vlaneseq
      %v2851 = vshrl.u32 %v2850, 7
      %v2852 = vsub.s32 0, %v2851
      %v2853 = vrot.slane %v2848, %v2852
      %v2854 = vlaneseq
      %v2855 = vshrl.u32 %v2854, 7
      %v2856 = vsub.s32 1, %v2855
      %v2857 = vrot.slane %v2848, %v2856
      %v2860 = vadd.f32 %v2842, %v2853
      %v2861 = vadd.f32 %v2844, %v2857
      %v2862 = vmax.f32 %v2860, 0.0
      %v2863 = vmax.f32 %v2861, 0.0
      %v2864 = vld [vmem:[%s4] sm:$0xff]
      %v2865 = vld [vmem:[%s4 + $0x8] sm:$0xff]
      %v2866 = vld [vmem:[%s4 + $0x10] sm:$0xf]
      %v2867 = vld [vmem:[%s4 + $0x18] sm:$0xf]
      %v2868 = vmul.f32 %v2862, %v2864
      %v2869 = vmul.f32 %v2863, %v2865
      %vm2870 = vcmask 1045504
      %v2871 = vsel %vm2870, %v2868, 0.0
      %vm2872 = vcmask 521216
      %v2873 = vsel %vm2872, %v2869, 0.0
      %v2874 = vadd.f32 %v2871, %v2873
      %2875 = vadd.xlane.f32.xlu0 %v2874
      %v2876 = vpop.xlane.xlu0 %2875
      %v2877 = vrot.slane %v2876, 4
      %v2878 = vadd.f32 %v2876, %v2877
      %v2879 = vrot.slane %v2878, 2
      %v2880 = vadd.f32 %v2878, %v2879
      %v2881 = vrot.slane %v2880, 1
      %v2882 = vadd.f32 %v2880, %v2881
      %s2883 = vtos %v2882
      %v2884 = vstv %s2883
      %vm2889 = vcmask 1041408
      %v2890 = vrot.slane %v2864, 6
      %v2891 = vrot.slane %v2866, 6
      %v2892 = vsel %vm2889, %v2890, %v2891
      %v2893 = vrot.slane %v2865, 6
      %v2894 = vrot.slane %v2867, 6
      %v2895 = vsel %vm2889, %v2893, %v2894
      %v2898 = vmul.f32 %v2862, %v2892
      %v2899 = vmul.f32 %v2863, %v2895
      %v2900 = vsel %vm2870, %v2898, 0.0
      %v2901 = vsel %vm2872, %v2899, 0.0
      %v2902 = vadd.f32 %v2900, %v2901
      %2903 = vadd.xlane.f32.xlu0 %v2902
      %v2904 = vpop.xlane.xlu0 %2903
      %v2905 = vrot.slane %v2904, 4
      %v2906 = vadd.f32 %v2904, %v2905
      %v2907 = vrot.slane %v2906, 2
      %v2908 = vadd.f32 %v2906, %v2907
      %v2909 = vrot.slane %v2908, 1
      %v2910 = vadd.f32 %v2908, %v2909
      %s2911 = vtos %v2910
      %v2912 = vstv %s2911
      %vm2913 = vcmask 7168
      %v2914 = vsel %vm2913, %v2884, %v2912
      %v2915 = vld [vmem:[%s5] sm:$0x1]
      %v2916 = vadd.f32 %v2914, %v2915
      %v2917 = vlaneseq
      %v2918 = vshrl.u32 %v2917, 7
      %v2919 = vsub.s32 0, %v2918
      %v2920 = vrot.slane %v2916, %v2919
      %vm2921 = vcmask 15360
      %2922 = vst.msk [vmem:[%s251] sm:$0xff] %vm2921, %v2920
      %p2923 = scmp.lt.s32.totalorder %s17, 1
      %s2924 = scalar_select %p2923, %s17, 1
      %s2925 = smul.addr %s2924, 8
      %s2926 = scalar_lea.vmem %s6, %s2925
      // Predicated region
      $region45: #{covnet_forward.1} parent=43 // pred_check
        %p2927 = pneg %p166
      $region46: #{covnet_forward.1} parent=43 // pred_check_branch
        %2929 = sbr.rel (%p2927) target = $region48
      $region47: #{covnet_forward.1} parent=43 // pred_region
        _
      $region48: #{covnet_forward.1} parent=43 // pred_fallthru
        _
    $region44: #{covnet_forward.1} parent=5 // pred_fallthru
      _
    %p2930 = scmp.le.s32.totalorder 2, %s12
    // Predicated region
    $region49: #{covnet_forward.1} parent=5 // pred_check
      %p2931 = pneg %p2930
    $region50: #{covnet_forward.1} parent=5 // pred_check_branch
      %2933 = sbr.rel (%p2931) target = $region52
    $region51: #{covnet_forward.1} parent=5 // pred_region
      %s2934 = ssub.s32 %s12, 2
      // Predicated region
      $region53: #{covnet_forward.1} parent=51 // pred_check
        %p2935 = pneg %p172
      $region54: #{covnet_forward.1} parent=51 // pred_check_branch
        %2937 = sbr.rel (%p2935) target = $region56
      $region55: #{covnet_forward.1} parent=51 // pred_region
        %p2938 = scmp.lt.s32.totalorder %s18, 1
        %s2939 = scalar_select %p2938, %s18, 1
        %s2940 = smul.addr %s2939, 8
        %s2941 = scalar_lea.vmem %s6, %s2940
      $region56: #{covnet_forward.1} parent=51 // pred_fallthru
        _
    $region52: #{covnet_forward.1} parent=5 // pred_fallthru
      _
  $region6: #{covnet_forward.1} parent=0 // loop_footer
    %s16 = sadd.s32 1, %s12
  $region7: #{covnet_forward.1} parent=0 // loop_footer_branch
    %11 = sbr.rel target = $region3
  $region8: #{covnet_forward.1} parent=0 // loop_exit
    _

</llo_original>
